<compile_context>
chip_gen: v7x
topology: tpu7x:2x2x1
jax: 0.10.0
libtpu: 0.0.40
codegen_flags: <defaults>
</compile_context>

<pallas_src>
import math
import functools

import jax
import jax.numpy as jnp
from jax import lax
from jax.experimental import pallas as pl
from jax.experimental.pallas import tpu as pltpu

SIGMA = 3.0            # module's self.sigma
NEG_SLOPE = 0.01       # PyTorch LeakyReLU default
QIN_DIM = 7 + 256      # 263
QIN_PAD = 384          # next multiple of 128 -> clean (8,128) tiling / unmasked MXU feed
INV_SQRT_D = 1.0 / math.sqrt(128.0)


def _leaky_relu(x):
    return jnp.where(x > 0, x, NEG_SLOPE * x)


def wp_attention_kernel(
    qin_ref,                                 # (B, 384)  f32   query-encoder input (padded)
    wpx_ref, wpy_ref,                        # (B, N, 1) f32   waypoint x / y (column form)
    actx_ref, acty_ref,                      # (B, 1, M) f32   actor x / y (row form)
    w1_ref, b1_ref,                          # (2, 128) f32, (1, 128) f32   wp_encoder layer 1
    wk_ref, bk_ref,                          # (128,128) bf16, (1,128) f32  fused w2@wk, b2@wk+bk
    q1_hbm, qb1_ref,                         # (384,512) bf16 in HBM, (1,512) f32
    q2_hbm, bq_ref,                          # (512,128) bf16 in HBM, (1,128) f32 (1/sqrt(128) folded)
    score_ref, misc_ref,                     # outputs: (B,1,N) softmax scores, (1,2)=[entropy, rank]
    q1_buf, q2_buf, dma_sem,                 # scratch: VMEM weight buffers + DMA semaphores
    *, B, N, M,
):
    f32 = jnp.float32
    bf16 = jnp.bfloat16
    BN = B * N

    # ---- kick off the big query-encoder weight DMAs (HBM -> VMEM), first-needed first.
    # They overlap the key-path / RBF compute below, which only needs the small weights
    # that Pallas already auto-DMA'd.
    cp1 = pltpu.make_async_copy(q1_hbm, q1_buf, dma_sem.at[0])
    cp2 = pltpu.make_async_copy(q2_hbm, q2_buf, dma_sem.at[1])
    cp1.start()
    cp2.start()

    # ---------------- key path: wp_encoder layer1 (VPU) + fused (w2@wk) bf16 matmul -----
    wpx = wpx_ref[...]                                                  # (B, N, 1) f32
    wpy = wpy_ref[...]                                                  # (B, N, 1) f32
    hk = _leaky_relu(wpx * w1_ref[0:1, :] + wpy * w1_ref[1:2, :]
                     + b1_ref[...])                                     # (B, N, 128) f32
    k2 = jnp.dot(hk.reshape(BN, 128).astype(bf16), wk_ref[...],
                 preferred_element_type=f32) + bk_ref[...]              # (BN, 128) f32
    k3 = k2.reshape(B, N, 128)

    # ---------------- waypoint/actor RBF kernel + per-batch norms (both orientations) ---
    actx = actx_ref[...]                                                # (B, 1, M)
    acty = acty_ref[...]
    dx = wpx - actx                                                     # (B, N, M)
    dy = wpy - acty
    d2 = dx * dx + dy * dy                                              # == cdist**2
    amask = (actx + acty != 0.0).astype(f32)                            # (B, 1, M)
    kv = jnp.exp(d2 * (-1.0 / (2.0 * SIGMA * SIGMA))) * amask           # (B, N, M)
    norm_col = jnp.sum(kv, axis=2, keepdims=True)                       # (B, N, 1)
    ones_row = jnp.ones((B, 1, M), f32)
    norm_row = jnp.einsum('bqm,bnm->bqn', ones_row, kv,
                          preferred_element_type=f32)                   # (B, 1, N) same values

    # ---------------- query path: fused bf16 weights straight into the MXU --------------
    cp1.wait()                                                          # only q1 needed here
    qin_b = qin_ref[...].astype(bf16)                                   # (B, 384)
    h = _leaky_relu(jnp.dot(qin_b, q1_buf[...],
                            preferred_element_type=f32) + qb1_ref[...]) # (B, 512) f32
    cp2.wait()
    q = jnp.dot(h.astype(bf16), q2_buf[...],
                preferred_element_type=f32) + bq_ref[...]               # (B, 128), scale folded

    # ---------------- batched scores + softmax over the N waypoints ---------------------
    q3b = q[:, None, :].astype(bf16)                                    # (B, 1, 128)
    k3b = k3.astype(bf16)
    s_row = jnp.einsum('bqd,bnd->bqn', q3b, k3b,
                       preferred_element_type=f32)                      # (B, 1, N)
    # same scores in column orientation (VPU product + lane reduce; avoids any transpose)
    s_col = jnp.sum(k3b.astype(f32) * q3b.astype(f32),
                    axis=2, keepdims=True)                              # (B, N, 1)
    m = jnp.max(s_row, axis=2, keepdims=True)                           # (B, 1, 1)
    e_row = jnp.exp(s_row - m)
    inv_denom = 1.0 / jnp.sum(e_row, axis=2, keepdims=True)             # (B, 1, 1)
    p_row = e_row * inv_denom                                           # (B, 1, N) softmax scores
    p_col = jnp.exp(s_col - m) * inv_denom                              # (B, N, 1)
    score_ref[...] = p_row

    # entropy = mean_b sum_n p*log(p + 1e-8)
    ent_b = jnp.sum(p_row * jnp.log(p_row + 1e-8),
                    axis=2, keepdims=True)                              # (B, 1, 1)

    # ---------------- batched pairwise ranking hinge ------------------------------------
    diff = norm_col - norm_row                                          # (B,N,N) norm[i]-norm[j]
    sd = p_col - p_row                                                  # (B,N,N) p[i]-p[j]
    # explicit sign (compare+select only; matches torch.sign incl. sign(0)=0)
    sgn = jnp.where(diff > 0.0, 1.0, jnp.where(diff < 0.0, -1.0, 0.0))
    hinge = jnp.maximum(-sgn * sd + 0.1, 0.0)                           # (B, N, N)
    ones_n = jnp.ones((B, 1, N), f32)
    hin_row = jnp.einsum('bqi,bij->bqj', ones_n, hinge,
                         preferred_element_type=f32)                    # (B, 1, N) column sums
    rank_b = jnp.sum(hin_row, axis=2, keepdims=True)                    # (B, 1, 1)

    # reduce over the (tiny, static) batch dim with an unrolled sum
    ent = ent_b[0] * (1.0 / B)                                          # (1, 1)
    rank = rank_b[0] * (1.0 / (B * N * N))                              # (1, 1)
    for b in range(1, B):
        ent = ent + ent_b[b] * (1.0 / B)
        rank = rank + rank_b[b] * (1.0 / (B * N * N))

    # single lane-dense store for the two scalars
    misc_ref[...] = jnp.concatenate([ent, rank], axis=1)                # (1, 2)


# ----------------------------------------------------------------------------
# BEV backbone stand-in (plain-JAX glue).
# TODO(synk): resnet6e is not defined in the reference source; this deterministic
# stand-in (2 strided convs + GAP + linear) produces the (B, 256) feature the rest of
# the module expects.
# ----------------------------------------------------------------------------
def _bev_with_coords(bev):
    # NOTE(perf review): this constant coords grid + concat is hoisted/constant-folded
    # under jit; in production pre-concatenate once or split the first conv by channel.
    B = bev.shape[0]
    g = jnp.linspace(-18.0, 18.0, 180)
    xx, yy = jnp.meshgrid(g, g, indexing='ij')
    coords = jnp.broadcast_to(jnp.stack([xx, yy])[None], (B, 2, 180, 180)).astype(bev.dtype)
    return jnp.concatenate([bev, coords], axis=1)


def bev_encoder(x, params):
    dn = ('NCHW', 'OIHW', 'NCHW')
    y = lax.conv_general_dilated(x, params['c1w'], (2, 2), 'SAME', dimension_numbers=dn)
    y = _leaky_relu(y + params['c1b'][None, :, None, None])
    y = lax.conv_general_dilated(y, params['c2w'], (2, 2), 'SAME', dimension_numbers=dn)
    y = _leaky_relu(y + params['c2b'][None, :, None, None])
    y = jnp.mean(y, axis=(2, 3))                              # global average pool -> (B, 32)
    return y @ params['fcw'] + params['fcb']                  # (B, 256)


def init_params(key):
    ks = jax.random.split(key, 9)

    def lin(k, fi, fo):
        return jax.random.normal(k, (fi, fo), jnp.float32) / math.sqrt(fi)

    def bias(fo):
        return jnp.zeros((1, fo), jnp.float32)

    return dict(
        # stand-in bev encoder
        c1w=jax.random.normal(ks[0], (16, 6, 3, 3), jnp.float32) / math.sqrt(6 * 9),
        c1b=jnp.zeros((16,), jnp.float32),
        c2w=jax.random.normal(ks[1], (32, 16, 3, 3), jnp.float32) / math.sqrt(16 * 9),
        c2b=jnp.zeros((32,), jnp.float32),
        fcw=lin(ks[2], 32, 256),
        fcb=jnp.zeros((256,), jnp.float32),
        # wp_encoder
        w1=lin(ks[3], 2, 128), b1=bias(128),
        w2=lin(ks[4], 128, 64), b2=bias(64),
        # query_encoder (7 + 256 = 263 inputs)
        q1=lin(ks[5], QIN_DIM, 512), qb1=bias(512),
        q2=lin(ks[6], 512, 256), qb2=bias(256),
        # W_q, W_k
        wq=lin(ks[7], 256, 128), bq=bias(128),
        wk=lin(ks[8], 64, 128), bk=bias(128),
    )


def prepare_attention_weights(params):
    """Offline weight prep: pad q1, fold q2@W_q (with 1/sqrt(128)) and w2@W_k into single
    layers, store the big weights as bf16 (halves the dominant HBM->VMEM traffic)."""
    bf16 = jnp.bfloat16
    q1p = jnp.pad(params['q1'],
                  ((0, QIN_PAD - params['q1'].shape[0]), (0, 0))).astype(bf16)      # (384,512)
    q2wq = (params['q2'] @ params['wq'] * INV_SQRT_D).astype(bf16)                  # (512,128)
    bq_f = (params['qb2'] @ params['wq'] + params['bq']) * INV_SQRT_D               # (1,128) f32
    wk_f = (params['w2'] @ params['wk']).astype(bf16)                               # (128,128)
    bk_f = params['b2'] @ params['wk'] + params['bk']                               # (1,128) f32
    return dict(q1=q1p, qb1=params['qb1'], q2wq=q2wq, bq=bq_f,
                w1=params['w1'], b1=params['b1'], wk=wk_f, bk=bk_f)


def wp_attention_forward(params, kweights, wp, bev, measurement, actor_pos, actor_cnt=None):
    del actor_cnt  # unused by the PyTorch forward as well
    B, N, _ = wp.shape
    M = actor_pos.shape[1]
    f32 = jnp.float32

    bev_feat = bev_encoder(_bev_with_coords(bev), params)                           # (B, 256)
    query_in = jnp.concatenate([bev_feat, measurement], axis=1).astype(f32)         # (B, 263)
    query_in = jnp.pad(query_in, ((0, 0), (0, QIN_PAD - query_in.shape[1])))        # (B, 384)

    wpx = wp[..., 0:1].astype(f32)                    # (B, N, 1)
    wpy = wp[..., 1:2].astype(f32)
    actx = actor_pos[:, :, 0].reshape(B, 1, M).astype(f32)   # (B, 1, M)
    acty = actor_pos[:, :, 1].reshape(B, 1, M).astype(f32)

    kern = functools.partial(wp_attention_kernel, B=B, N=N, M=M)
    vmem = pl.BlockSpec(memory_space=pltpu.MemorySpace.VMEM)
    hbm = pl.BlockSpec(memory_space=pl.ANY)           # raw HBM ref; manually DMA'd in-kernel

    score3, misc = pl.pallas_call(
        kern,
        out_shape=(jax.ShapeDtypeStruct((B, 1, N), jnp.float32),
                   jax.ShapeDtypeStruct((1, 2), jnp.float32)),
        in_specs=[vmem,                               # query_in
                  vmem, vmem, vmem, vmem,             # wpx, wpy, actx, acty
                  vmem, vmem,                         # w1, b1
                  vmem, vmem,                         # wk_fused, bk_fused
                  hbm, vmem,                          # q1 (HBM), qb1
                  hbm, vmem],                         # q2wq (HBM), bq_fused
        out_specs=(vmem, vmem),
        scratch_shapes=[pltpu.VMEM(kweights['q1'].shape, jnp.bfloat16),
                        pltpu.VMEM(kweights['q2wq'].shape, jnp.bfloat16),
                        pltpu.SemaphoreType.DMA((2,))],
    )(query_in, wpx, wpy, actx, acty,
      kweights['w1'], kweights['b1'], kweights['wk'], kweights['bk'],
      kweights['q1'], kweights['qb1'], kweights['q2wq'], kweights['bq'])

    return score3.reshape(B, N), misc[0, 0], misc[0, 1]


# ----------------------------------------------------------------------------
# References for correctness checking.
# ----------------------------------------------------------------------------
def mirror_reference(params, kweights, wp, bev, measurement, actor_pos):
    """Plain-JAX mirror of the exact math the kernel performs (fused bf16 weights,
    bf16 MXU matmuls with f32 accumulation).  Tight check."""
    f32, bf16 = jnp.float32, jnp.bfloat16
    B, N, _ = wp.shape
    bev_feat = bev_encoder(_bev_with_coords(bev), params)
    qin = jnp.concatenate([bev_feat, measurement], axis=1).astype(f32)
    qin = jnp.pad(qin, ((0, 0), (0, QIN_PAD - qin.shape[1])))
    h = jax.nn.leaky_relu(jnp.dot(qin.astype(bf16), kweights['q1'],
                                  preferred_element_type=f32) + kweights['qb1'], NEG_SLOPE)
    q = jnp.dot(h.astype(bf16), kweights['q2wq'],
                preferred_element_type=f32) + kweights['bq']                       # (B,128)
    wpx, wpy = wp[..., 0:1], wp[..., 1:2]
    w1 = kweights['w1']
    hk = jax.nn.leaky_relu(wpx * w1[0:1, :] + wpy * w1[1:2, :] + kweights['b1'], NEG_SLOPE)
    k = jnp.dot(hk.reshape(B * N, 128).astype(bf16), kweights['wk'],
                preferred_element_type=f32) + kweights['bk']
    k = k.reshape(B, N, 128)
    s = jnp.einsum('bqd,bnd->bqn', q[:, None, :].astype(bf16), k.astype(bf16),
                   preferred_element_type=f32)[:, 0, :]                            # (B,N)
    p = jax.nn.softmax(s, axis=1)
    d2 = jnp.sum((wp[:, :, None, :] - actor_pos[:, None, :, :]) ** 2, axis=-1)
    kv = jnp.exp(-d2 / (2.0 * SIGMA ** 2))
    kv = kv * (actor_pos.sum(axis=-1) != 0)[:, None, :].astype(f32)
    nv = jnp.sum(kv, axis=-1)
    diff = nv[:, :, None] - nv[:, None, :]
    sd = p[:, :, None] - p[:, None, :]
    rank = jnp.mean(jnp.maximum(0.0, -jnp.sign(diff) * sd + 0.1))
    ent = jnp.mean(jnp.sum(p * jnp.log(p + 1e-8), axis=1))
    return p, ent, rank


def reference_forward(params, wp, bev, measurement, actor_pos):
    """Pure-f32, un-fused mirror of the PyTorch forward (loose semantics check)."""
    B, N, _ = wp.shape
    bev_feat = bev_encoder(_bev_with_coords(bev), params)
    q = jnp.concatenate([bev_feat, measurement], axis=1)
    q = jax.nn.leaky_relu(q @ params['q1'] + params['qb1'], NEG_SLOPE)
    q = q @ params['q2'] + params['qb2']
    q = q @ params['wq'] + params['bq']                                   # (B, 128)
    k = jax.nn.leaky_relu(wp @ params['w1'] + params['b1'], NEG_SLOPE)
    k = k @ params['w2'] + params['b2']
    k = k @ params['wk'] + params['bk']                                   # (B, N, 128)
    score = jnp.einsum('bd,bnd->bn', q, k) / jnp.sqrt(128.0)
    d2 = jnp.sum((wp[:, :, None, :] - actor_pos[:, None, :, :]) ** 2, axis=-1)
    kv = jnp.exp(-d2 / (2.0 * SIGMA ** 2))
    mask = (actor_pos.sum(axis=-1) != 0)[:, None, :]
    kv = kv * mask.astype(jnp.float32)
    nv = jnp.sum(kv, axis=-1)
    score = jax.nn.softmax(score, axis=1)
    diff = nv[:, :, None] - nv[:, None, :]
    sd = score[:, :, None] - score[:, None, :]
    rank = jnp.mean(jnp.maximum(0.0, -jnp.sign(diff) * sd + 0.1))
    ent = jnp.mean(jnp.sum(score * jnp.log(score + 1e-8), axis=1))
    return score, ent, rank


if __name__ == "__main__":
    key = jax.random.PRNGKey(0)
    kp, kwp, kbev, kmeas, kact = jax.random.split(key, 5)
    B, N, M = 2, 8, 4

    params = init_params(kp)
    kweights = prepare_attention_weights(params)   # offline fusion + bf16 weight storage

    wp = jax.random.uniform(kwp, (B, N, 2), jnp.float32, minval=-12.0, maxval=12.0)
    bev = jax.random.normal(kbev, (B, 4, 180, 180), jnp.float32)
    measurement = jax.random.normal(kmeas, (B, 7), jnp.float32)
    actor_pos = jax.random.uniform(kact, (B, M, 2), jnp.float32, minval=-15.0, maxval=15.0)
    actor_pos = actor_pos.at[:, -1, :].set(0.0)     # a zero actor row exercises the mask
    actor_cnt = jnp.full((B,), M - 1, jnp.int32)

    fwd = jax.jit(wp_attention_forward)
    score, ent, rank = fwd(params, kweights, wp, bev, measurement, actor_pos, actor_cnt)
    jax.block_until_ready((score, ent, rank))

    # Tight check: plain-JAX mirror of the exact (fused, bf16-weight) math the kernel runs.
    score_m, ent_m, rank_m = mirror_reference(params, kweights, wp, bev, measurement, actor_pos)
    assert jnp.allclose(score, score_m, atol=5e-3, rtol=5e-3), (score, score_m)
    assert jnp.allclose(ent, ent_m, atol=5e-3, rtol=5e-3), (ent, ent_m)
    assert jnp.allclose(rank, rank_m, atol=5e-3, rtol=5e-3), (rank, rank_m)

    # Loose check vs the un-fused f32 module semantics (bf16 weight/activation storage is
    # an intentional, review-requested optimization; it changes numerics slightly).
    score_r, ent_r, rank_r = reference_forward(params, wp, bev, measurement, actor_pos)
    assert jnp.allclose(score, score_r, atol=0.1, rtol=0.1), (score, score_r)
    assert jnp.allclose(ent, ent_r, atol=0.1, rtol=0.1), (ent, ent_r)
    assert jnp.allclose(rank, rank_r, atol=0.1, rtol=0.1), (rank, rank_r)

    print("KERNEL_OK")
</pallas_src>

<mosaic_0001>
module attributes {stable_mosaic.version = 11 : i64} {
  func.func @wp_attention_kernel(%arg0: memref<2x384xf32, #tpu.memory_space<vmem>>, %arg1: memref<2x8x1xf32, #tpu.memory_space<vmem>>, %arg2: memref<2x8x1xf32, #tpu.memory_space<vmem>>, %arg3: memref<2x1x4xf32, #tpu.memory_space<vmem>>, %arg4: memref<2x1x4xf32, #tpu.memory_space<vmem>>, %arg5: memref<2x128xf32, #tpu.memory_space<vmem>>, %arg6: memref<1x128xf32, #tpu.memory_space<vmem>>, %arg7: memref<128x128xbf16, #tpu.memory_space<vmem>>, %arg8: memref<1x128xf32, #tpu.memory_space<vmem>>, %arg9: memref<384x512xbf16, #tpu.memory_space<any>>, %arg10: memref<1x512xf32, #tpu.memory_space<vmem>>, %arg11: memref<512x128xbf16, #tpu.memory_space<any>>, %arg12: memref<1x128xf32, #tpu.memory_space<vmem>>, %arg13: memref<2x1x8xf32, #tpu.memory_space<vmem>>, %arg14: memref<1x2xf32, #tpu.memory_space<vmem>>, %arg15: memref<384x512xbf16, #tpu.memory_space<vmem>>, %arg16: memref<512x128xbf16, #tpu.memory_space<vmem>>, %arg17: memref<2x!tpu.dma_semaphore, #tpu.memory_space<semaphore_mem>>) attributes {dimension_semantics = [], scalar_prefetch = 0 : i64, scratch_operands = 3 : i64, tpu.core_type = #tpu.core_type<tc>} {
    %c0_i32 = arith.constant 0 : i32
    %0 = tpu.memref_slice %arg17[%c0_i32] : memref<2x!tpu.dma_semaphore, #tpu.memory_space<semaphore_mem>> -> memref<1x!tpu.dma_semaphore, #tpu.memory_space<semaphore_mem>>
    %1 = tpu.memref_squeeze %0 : memref<1x!tpu.dma_semaphore, #tpu.memory_space<semaphore_mem>> -> memref<!tpu.dma_semaphore, #tpu.memory_space<semaphore_mem>>
    tpu.enqueue_dma source(%arg9 : memref<384x512xbf16, #tpu.memory_space<any>>) target(%arg15 : memref<384x512xbf16, #tpu.memory_space<vmem>>) target_semaphore(%1 : memref<!tpu.dma_semaphore, #tpu.memory_space<semaphore_mem>>)
    %c1_i32 = arith.constant 1 : i32
    %2 = tpu.memref_slice %arg17[%c1_i32] : memref<2x!tpu.dma_semaphore, #tpu.memory_space<semaphore_mem>> -> memref<1x!tpu.dma_semaphore, #tpu.memory_space<semaphore_mem>>
    %3 = tpu.memref_squeeze %2 : memref<1x!tpu.dma_semaphore, #tpu.memory_space<semaphore_mem>> -> memref<!tpu.dma_semaphore, #tpu.memory_space<semaphore_mem>>
    tpu.enqueue_dma source(%arg11 : memref<512x128xbf16, #tpu.memory_space<any>>) target(%arg16 : memref<512x128xbf16, #tpu.memory_space<vmem>>) target_semaphore(%3 : memref<!tpu.dma_semaphore, #tpu.memory_space<semaphore_mem>>)
    %c0 = arith.constant 0 : index
    %c0_0 = arith.constant 0 : index
    %c0_1 = arith.constant 0 : index
    %4 = vector.load %arg1[%c0, %c0_0, %c0_1] : memref<2x8x1xf32, #tpu.memory_space<vmem>>, vector<2x8x1xf32>
    %c0_2 = arith.constant 0 : index
    %c0_3 = arith.constant 0 : index
    %c0_4 = arith.constant 0 : index
    %5 = vector.load %arg2[%c0_2, %c0_3, %c0_4] : memref<2x8x1xf32, #tpu.memory_space<vmem>>, vector<2x8x1xf32>
    %c0_5 = arith.constant 0 : index
    %c0_6 = arith.constant 0 : index
    %6 = vector.load %arg5[%c0_5, %c0_6] : memref<2x128xf32, #tpu.memory_space<vmem>>, vector<1x128xf32>
    %7 = vector.shape_cast %6 : vector<1x128xf32> to vector<1x1x128xf32>
    %8 = vector.broadcast %4 : vector<2x8x1xf32> to vector<2x8x128xf32>
    %9 = vector.broadcast %7 : vector<1x1x128xf32> to vector<2x8x128xf32>
    %10 = arith.mulf %8, %9 : vector<2x8x128xf32>
    %c1 = arith.constant 1 : index
    %c0_7 = arith.constant 0 : index
    %11 = vector.load %arg5[%c1, %c0_7] : memref<2x128xf32, #tpu.memory_space<vmem>>, vector<1x128xf32>
    %12 = vector.shape_cast %11 : vector<1x128xf32> to vector<1x1x128xf32>
    %13 = vector.broadcast %5 : vector<2x8x1xf32> to vector<2x8x128xf32>
    %14 = vector.broadcast %12 : vector<1x1x128xf32> to vector<2x8x128xf32>
    %15 = arith.mulf %13, %14 : vector<2x8x128xf32>
    %16 = arith.addf %10, %15 : vector<2x8x128xf32>
    %c0_8 = arith.constant 0 : index
    %c0_9 = arith.constant 0 : index
    %17 = vector.load %arg6[%c0_8, %c0_9] : memref<1x128xf32, #tpu.memory_space<vmem>>, vector<1x128xf32>
    %18 = vector.shape_cast %17 : vector<1x128xf32> to vector<1x1x128xf32>
    %19 = vector.broadcast %18 : vector<1x1x128xf32> to vector<2x8x128xf32>
    %20 = arith.addf %16, %19 : vector<2x8x128xf32>
    %cst = arith.constant 0.000000e+00 : f32
    %21 = vector.broadcast %cst : f32 to vector<2x8x128xf32>
    %22 = arith.cmpf ogt, %20, %21 : vector<2x8x128xf32>
    %cst_10 = arith.constant 0.00999999977 : f32
    %23 = vector.broadcast %cst_10 : f32 to vector<2x8x128xf32>
    %24 = arith.mulf %23, %20 : vector<2x8x128xf32>
    %25 = arith.select %22, %20, %24 : vector<2x8x128xi1>, vector<2x8x128xf32>
    %26 = vector.shape_cast %25 : vector<2x8x128xf32> to vector<16x128xf32>
    %27 = arith.truncf %26 : vector<16x128xf32> to vector<16x128xbf16>
    %c0_11 = arith.constant 0 : index
    %c0_12 = arith.constant 0 : index
    %28 = vector.load %arg7[%c0_11, %c0_12] : memref<128x128xbf16, #tpu.memory_space<vmem>>, vector<128x128xbf16>
    %cst_13 = arith.constant dense<0.000000e+00> : vector<16x128xf32>
    %29 = tpu.matmul %27, %28, %cst_13 {dimension_numbers = #tpu.dot_dimension_numbers<[1], [0], [0], [1], [0, 0, 1, 1], [], []>} : vector<16x128xbf16>, vector<128x128xbf16>, vector<16x128xf32> -> vector<16x128xf32>
    %c0_14 = arith.constant 0 : index
    %c0_15 = arith.constant 0 : index
    %30 = vector.load %arg8[%c0_14, %c0_15] : memref<1x128xf32, #tpu.memory_space<vmem>>, vector<1x128xf32>
    %31 = vector.broadcast %30 : vector<1x128xf32> to vector<16x128xf32>
    %32 = arith.addf %29, %31 : vector<16x128xf32>
    %33 = vector.shape_cast %32 : vector<16x128xf32> to vector<2x8x128xf32>
    %c0_16 = arith.constant 0 : index
    %c0_17 = arith.constant 0 : index
    %c0_18 = arith.constant 0 : index
    %34 = vector.load %arg3[%c0_16, %c0_17, %c0_18] : memref<2x1x4xf32, #tpu.memory_space<vmem>>, vector<2x1x4xf32>
    %c0_19 = arith.constant 0 : index
    %c0_20 = arith.constant 0 : index
    %c0_21 = arith.constant 0 : index
    %35 = vector.load %arg4[%c0_19, %c0_20, %c0_21] : memref<2x1x4xf32, #tpu.memory_space<vmem>>, vector<2x1x4xf32>
    %36 = vector.broadcast %4 : vector<2x8x1xf32> to vector<2x8x4xf32>
    %37 = vector.broadcast %34 : vector<2x1x4xf32> to vector<2x8x4xf32>
    %38 = arith.subf %36, %37 : vector<2x8x4xf32>
    %39 = vector.broadcast %5 : vector<2x8x1xf32> to vector<2x8x4xf32>
    %40 = vector.broadcast %35 : vector<2x1x4xf32> to vector<2x8x4xf32>
    %41 = arith.subf %39, %40 : vector<2x8x4xf32>
    %42 = arith.mulf %38, %38 : vector<2x8x4xf32>
    %43 = arith.mulf %41, %41 : vector<2x8x4xf32>
    %44 = arith.addf %42, %43 : vector<2x8x4xf32>
    %45 = arith.addf %34, %35 : vector<2x1x4xf32>
    %cst_22 = arith.constant 0.000000e+00 : f32
    %46 = vector.broadcast %cst_22 : f32 to vector<2x1x4xf32>
    %47 = arith.cmpf one, %45, %46 : vector<2x1x4xf32>
    %48 = arith.extui %47 : vector<2x1x4xi1> to vector<2x1x4xi32>
    %49 = arith.sitofp %48 : vector<2x1x4xi32> to vector<2x1x4xf32>
    %cst_23 = arith.constant -0.055555556 : f32
    %50 = vector.broadcast %cst_23 : f32 to vector<2x8x4xf32>
    %51 = arith.mulf %44, %50 : vector<2x8x4xf32>
    %52 = math.exp %51 : vector<2x8x4xf32>
    %53 = vector.broadcast %49 : vector<2x1x4xf32> to vector<2x8x4xf32>
    %54 = arith.mulf %52, %53 : vector<2x8x4xf32>
    %cst_24 = arith.constant dense<0.000000e+00> : vector<2x8xf32>
    %55 = vector.multi_reduction <add>, %54, %cst_24 [2] : vector<2x8x4xf32> to vector<2x8xf32>
    %56 = vector.shape_cast %55 : vector<2x8xf32> to vector<2x8x1xf32>
    %cst_25 = arith.constant 1.000000e+00 : f32
    %57 = vector.broadcast %cst_25 : f32 to vector<2x1x4xf32>
    "tpu.trace_start"() <{level = 10 : i32, message = "bqm,bnm->bqn"}> : () -> ()
    %cst_26 = arith.constant dense<0.000000e+00> : vector<2x1x8xf32>
    %58 = tpu.matmul %57, %54, %cst_26 {dimension_numbers = #tpu.dot_dimension_numbers<[2], [2], [1], [1], [0, 0, 0, 1, 1, 1], [0], [0]>} : vector<2x1x4xf32>, vector<2x8x4xf32>, vector<2x1x8xf32> -> vector<2x1x8xf32>
    %c0_i32_27 = arith.constant 0 : i32
    "tpu.trace_stop"() : () -> ()
    %59 = tpu.memref_slice %arg17[%c0_i32_27] : memref<2x!tpu.dma_semaphore, #tpu.memory_space<semaphore_mem>> -> memref<1x!tpu.dma_semaphore, #tpu.memory_space<semaphore_mem>>
    %60 = tpu.memref_squeeze %59 : memref<1x!tpu.dma_semaphore, #tpu.memory_space<semaphore_mem>> -> memref<!tpu.dma_semaphore, #tpu.memory_space<semaphore_mem>>
    tpu.wait_dma2 semaphore(%60 : memref<!tpu.dma_semaphore, #tpu.memory_space<semaphore_mem>>) src(%arg9 : memref<384x512xbf16, #tpu.memory_space<any>>) dst(%arg15 : memref<384x512xbf16, #tpu.memory_space<vmem>>)
    %c0_28 = arith.constant 0 : index
    %c0_29 = arith.constant 0 : index
    %61 = vector.load %arg0[%c0_28, %c0_29] : memref<2x384xf32, #tpu.memory_space<vmem>>, vector<2x384xf32>
    %62 = arith.truncf %61 : vector<2x384xf32> to vector<2x384xbf16>
    %c0_30 = arith.constant 0 : index
    %c0_31 = arith.constant 0 : index
    %63 = vector.load %arg15[%c0_30, %c0_31] : memref<384x512xbf16, #tpu.memory_space<vmem>>, vector<384x512xbf16>
    %cst_32 = arith.constant dense<0.000000e+00> : vector<2x512xf32>
    %64 = tpu.matmul %62, %63, %cst_32 {dimension_numbers = #tpu.dot_dimension_numbers<[1], [0], [0], [1], [0, 0, 1, 1], [], []>} : vector<2x384xbf16>, vector<384x512xbf16>, vector<2x512xf32> -> vector<2x512xf32>
    %c0_33 = arith.constant 0 : index
    %c0_34 = arith.constant 0 : index
    %65 = vector.load %arg10[%c0_33, %c0_34] : memref<1x512xf32, #tpu.memory_space<vmem>>, vector<1x512xf32>
    %66 = vector.broadcast %65 : vector<1x512xf32> to vector<2x512xf32>
    %67 = arith.addf %64, %66 : vector<2x512xf32>
    %cst_35 = arith.constant 0.000000e+00 : f32
    %68 = vector.broadcast %cst_35 : f32 to vector<2x512xf32>
    %69 = arith.cmpf ogt, %67, %68 : vector<2x512xf32>
    %cst_36 = arith.constant 0.00999999977 : f32
    %70 = vector.broadcast %cst_36 : f32 to vector<2x512xf32>
    %71 = arith.mulf %70, %67 : vector<2x512xf32>
    %72 = arith.select %69, %67, %71 : vector<2x512xi1>, vector<2x512xf32>
    %c1_i32_37 = arith.constant 1 : i32
    %73 = tpu.memref_slice %arg17[%c1_i32_37] : memref<2x!tpu.dma_semaphore, #tpu.memory_space<semaphore_mem>> -> memref<1x!tpu.dma_semaphore, #tpu.memory_space<semaphore_mem>>
    %74 = tpu.memref_squeeze %73 : memref<1x!tpu.dma_semaphore, #tpu.memory_space<semaphore_mem>> -> memref<!tpu.dma_semaphore, #tpu.memory_space<semaphore_mem>>
    tpu.wait_dma2 semaphore(%74 : memref<!tpu.dma_semaphore, #tpu.memory_space<semaphore_mem>>) src(%arg11 : memref<512x128xbf16, #tpu.memory_space<any>>) dst(%arg16 : memref<512x128xbf16, #tpu.memory_space<vmem>>)
    %75 = arith.truncf %72 : vector<2x512xf32> to vector<2x512xbf16>
    %c0_38 = arith.constant 0 : index
    %c0_39 = arith.constant 0 : index
    %76 = vector.load %arg16[%c0_38, %c0_39] : memref<512x128xbf16, #tpu.memory_space<vmem>>, vector<512x128xbf16>
    %cst_40 = arith.constant dense<0.000000e+00> : vector<2x128xf32>
    %77 = tpu.matmul %75, %76, %cst_40 {dimension_numbers = #tpu.dot_dimension_numbers<[1], [0], [0], [1], [0, 0, 1, 1], [], []>} : vector<2x512xbf16>, vector<512x128xbf16>, vector<2x128xf32> -> vector<2x128xf32>
    %c0_41 = arith.constant 0 : index
    %c0_42 = arith.constant 0 : index
    %78 = vector.load %arg12[%c0_41, %c0_42] : memref<1x128xf32, #tpu.memory_space<vmem>>, vector<1x128xf32>
    %79 = vector.broadcast %78 : vector<1x128xf32> to vector<2x128xf32>
    %80 = arith.addf %77, %79 : vector<2x128xf32>
    %81 = vector.shape_cast %80 : vector<2x128xf32> to vector<2x1x128xf32>
    %82 = arith.truncf %81 : vector<2x1x128xf32> to vector<2x1x128xbf16>
    %83 = arith.truncf %33 : vector<2x8x128xf32> to vector<2x8x128xbf16>
    "tpu.trace_start"() <{level = 10 : i32, message = "bqd,bnd->bqn"}> : () -> ()
    %cst_43 = arith.constant dense<0.000000e+00> : vector<2x1x8xf32>
    %84 = tpu.matmul %82, %83, %cst_43 {dimension_numbers = #tpu.dot_dimension_numbers<[2], [2], [1], [1], [0, 0, 0, 1, 1, 1], [0], [0]>} : vector<2x1x128xbf16>, vector<2x8x128xbf16>, vector<2x1x8xf32> -> vector<2x1x8xf32>
    "tpu.trace_stop"() : () -> ()
    %85 = arith.extf %83 : vector<2x8x128xbf16> to vector<2x8x128xf32>
    %86 = arith.extf %82 : vector<2x1x128xbf16> to vector<2x1x128xf32>
    %87 = vector.broadcast %86 : vector<2x1x128xf32> to vector<2x8x128xf32>
    %88 = arith.mulf %85, %87 : vector<2x8x128xf32>
    %cst_44 = arith.constant dense<0.000000e+00> : vector<2x8xf32>
    %89 = vector.multi_reduction <add>, %88, %cst_44 [2] : vector<2x8x128xf32> to vector<2x8xf32>
    %90 = vector.shape_cast %89 : vector<2x8xf32> to vector<2x8x1xf32>
    %cst_45 = arith.constant dense<0xFF800000> : vector<2x1xf32>
    %91 = vector.multi_reduction <maximumf>, %84, %cst_45 [2] : vector<2x1x8xf32> to vector<2x1xf32>
    %92 = vector.shape_cast %91 : vector<2x1xf32> to vector<2x1x1xf32>
    %93 = vector.broadcast %92 : vector<2x1x1xf32> to vector<2x1x8xf32>
    %94 = arith.subf %84, %93 : vector<2x1x8xf32>
    %95 = math.exp %94 : vector<2x1x8xf32>
    %cst_46 = arith.constant dense<0.000000e+00> : vector<2x1xf32>
    %96 = vector.multi_reduction <add>, %95, %cst_46 [2] : vector<2x1x8xf32> to vector<2x1xf32>
    %97 = vector.shape_cast %96 : vector<2x1xf32> to vector<2x1x1xf32>
    %cst_47 = arith.constant 1.000000e+00 : f32
    %98 = vector.broadcast %cst_47 : f32 to vector<2x1x1xf32>
    %99 = arith.divf %98, %97 : vector<2x1x1xf32>
    %100 = vector.broadcast %99 : vector<2x1x1xf32> to vector<2x1x8xf32>
    %101 = arith.mulf %95, %100 : vector<2x1x8xf32>
    %102 = vector.broadcast %92 : vector<2x1x1xf32> to vector<2x8x1xf32>
    %103 = arith.subf %90, %102 : vector<2x8x1xf32>
    %104 = math.exp %103 : vector<2x8x1xf32>
    %105 = vector.broadcast %99 : vector<2x1x1xf32> to vector<2x8x1xf32>
    %106 = arith.mulf %104, %105 : vector<2x8x1xf32>
    %c0_48 = arith.constant 0 : index
    %c0_49 = arith.constant 0 : index
    %c0_50 = arith.constant 0 : index
    %107 = vector.load %arg13[%c0_48, %c0_49, %c0_50] : memref<2x1x8xf32, #tpu.memory_space<vmem>>, vector<2x1x8xf32>
    tpu.vector_store %arg13[%c0_48, %c0_49, %c0_50], %101 {strides = array<i32>} : memref<2x1x8xf32, #tpu.memory_space<vmem>>, vector<2x1x8xf32>,
    %cst_51 = arith.constant 9.99999993E-9 : f32
    %108 = vector.broadcast %cst_51 : f32 to vector<2x1x8xf32>
    %109 = arith.addf %101, %108 : vector<2x1x8xf32>
    %110 = math.log %109 : vector<2x1x8xf32>
    %111 = arith.mulf %101, %110 : vector<2x1x8xf32>
    %cst_52 = arith.constant dense<0.000000e+00> : vector<2x1xf32>
    %112 = vector.multi_reduction <add>, %111, %cst_52 [2] : vector<2x1x8xf32> to vector<2x1xf32>
    %113 = vector.shape_cast %112 : vector<2x1xf32> to vector<2x1x1xf32>
    %114 = vector.broadcast %56 : vector<2x8x1xf32> to vector<2x8x8xf32>
    %115 = vector.broadcast %58 : vector<2x1x8xf32> to vector<2x8x8xf32>
    %116 = arith.subf %114, %115 : vector<2x8x8xf32>
    %117 = vector.broadcast %106 : vector<2x8x1xf32> to vector<2x8x8xf32>
    %118 = vector.broadcast %101 : vector<2x1x8xf32> to vector<2x8x8xf32>
    %119 = arith.subf %117, %118 : vector<2x8x8xf32>
    %cst_53 = arith.constant 0.000000e+00 : f32
    %120 = vector.broadcast %cst_53 : f32 to vector<2x8x8xf32>
    %121 = arith.cmpf ogt, %116, %120 : vector<2x8x8xf32>
    %cst_54 = arith.constant 0.000000e+00 : f32
    %122 = vector.broadcast %cst_54 : f32 to vector<2x8x8xf32>
    %123 = arith.cmpf olt, %116, %122 : vector<2x8x8xf32>
    %cst_55 = arith.constant -1.000000e+00 : f32
    %cst_56 = arith.constant 0.000000e+00 : f32
    %124 = vector.broadcast %cst_55 : f32 to vector<2x8x8xf32>
    %125 = vector.broadcast %cst_56 : f32 to vector<2x8x8xf32>
    %126 = arith.select %123, %124, %125 : vector<2x8x8xi1>, vector<2x8x8xf32>
    %cst_57 = arith.constant 1.000000e+00 : f32
    %127 = vector.broadcast %cst_57 : f32 to vector<2x8x8xf32>
    %128 = arith.select %121, %127, %126 : vector<2x8x8xi1>, vector<2x8x8xf32>
    %cst_58 = arith.constant 0.000000e+00 : f32
    %129 = vector.broadcast %cst_58 : f32 to vector<2x8x8xf32>
    %130 = arith.subf %129, %128 : vector<2x8x8xf32>
    %131 = arith.mulf %130, %119 : vector<2x8x8xf32>
    %cst_59 = arith.constant 1.000000e-01 : f32
    %132 = vector.broadcast %cst_59 : f32 to vector<2x8x8xf32>
    %133 = arith.addf %131, %132 : vector<2x8x8xf32>
    %cst_60 = arith.constant 0.000000e+00 : f32
    %134 = vector.broadcast %cst_60 : f32 to vector<2x8x8xf32>
    %135 = arith.maximumf %133, %134 : vector<2x8x8xf32>
    %cst_61 = arith.constant 1.000000e+00 : f32
    %136 = vector.broadcast %cst_61 : f32 to vector<2x1x8xf32>
    "tpu.trace_start"() <{level = 10 : i32, message = "bqi,bij->bqj"}> : () -> ()
    %cst_62 = arith.constant dense<0.000000e+00> : vector<2x1x8xf32>
    %137 = tpu.matmul %136, %135, %cst_62 {dimension_numbers = #tpu.dot_dimension_numbers<[2], [1], [1], [2], [0, 0, 0, 1, 1, 2], [0], [0]>} : vector<2x1x8xf32>, vector<2x8x8xf32>, vector<2x1x8xf32> -> vector<2x1x8xf32>
    "tpu.trace_stop"() : () -> ()
    %cst_63 = arith.constant dense<0.000000e+00> : vector<2x1xf32>
    %138 = vector.multi_reduction <add>, %137, %cst_63 [2] : vector<2x1x8xf32> to vector<2x1xf32>
    %139 = vector.shape_cast %138 : vector<2x1xf32> to vector<2x1x1xf32>
    %140 = vector.extract_strided_slice %113 {offsets = [0, 0, 0], sizes = [1, 1, 1], strides = [1, 1, 1]} : vector<2x1x1xf32> to vector<1x1x1xf32>
    %141 = vector.shape_cast %140 : vector<1x1x1xf32> to vector<1x1xf32>
    %cst_64 = arith.constant 5.000000e-01 : f32
    %142 = vector.broadcast %cst_64 : f32 to vector<1x1xf32>
    %143 = arith.mulf %141, %142 : vector<1x1xf32>
    %144 = vector.extract_strided_slice %139 {offsets = [0, 0, 0], sizes = [1, 1, 1], strides = [1, 1, 1]} : vector<2x1x1xf32> to vector<1x1x1xf32>
    %145 = vector.shape_cast %144 : vector<1x1x1xf32> to vector<1x1xf32>
    %cst_65 = arith.constant 7.812500e-03 : f32
    %146 = vector.broadcast %cst_65 : f32 to vector<1x1xf32>
    %147 = arith.mulf %145, %146 : vector<1x1xf32>
    %148 = vector.extract_strided_slice %113 {offsets = [1, 0, 0], sizes = [1, 1, 1], strides = [1, 1, 1]} : vector<2x1x1xf32> to vector<1x1x1xf32>
    %149 = vector.shape_cast %148 : vector<1x1x1xf32> to vector<1x1xf32>
    %cst_66 = arith.constant 5.000000e-01 : f32
    %150 = vector.broadcast %cst_66 : f32 to vector<1x1xf32>
    %151 = arith.mulf %149, %150 : vector<1x1xf32>
    %152 = arith.addf %143, %151 : vector<1x1xf32>
    %153 = vector.extract_strided_slice %139 {offsets = [1, 0, 0], sizes = [1, 1, 1], strides = [1, 1, 1]} : vector<2x1x1xf32> to vector<1x1x1xf32>
    %154 = vector.shape_cast %153 : vector<1x1x1xf32> to vector<1x1xf32>
    %cst_67 = arith.constant 7.812500e-03 : f32
    %155 = vector.broadcast %cst_67 : f32 to vector<1x1xf32>
    %156 = arith.mulf %154, %155 : vector<1x1xf32>
    %157 = arith.addf %147, %156 : vector<1x1xf32>
    %158 = tpu.concatenate %152, %157 in 1 : vector<1x1xf32>, vector<1x1xf32> -> vector<1x2xf32>
    %c0_68 = arith.constant 0 : index
    %c0_69 = arith.constant 0 : index
    %159 = vector.load %arg14[%c0_68, %c0_69] : memref<1x2xf32, #tpu.memory_space<vmem>>, vector<1x2xf32>
    tpu.vector_store %arg14[%c0_68, %c0_69], %158 {strides = array<i32>} : memref<1x2xf32, #tpu.memory_space<vmem>>, vector<1x2xf32>,
    return
  }
}

</mosaic_0001>

<llo_original>
// kernel: wp_attention_forward.1
$region0: #{wp_attention_forward.1}
  #allocation0 [shape = 'u32[]', space=smem, size = 0x4, offset = 0x4, fixed_abs, tag = 'smem constant byte address 0x4 - core index']
  #allocation1 [shape = 'u32[144,128]{1,0:T(1,128)}', space=vmem, size = 0x12000, scoped, tag = 'internal scratch']
  #allocation2 [shape = 'bf16[384,512]{1,0:T(16,128)(2,1)}', space=vmem, size = 0x60000, scoped, tag = 'scratch operand']
  #allocation3 [shape = 'bf16[512,128]{1,0:T(16,128)(2,1)}', space=vmem, size = 0x20000, scoped, tag = 'scratch operand']
  #allocation4 [shape = 's32[2]{0}', space=sflag, size = 0x8, scoped, tag = 'scratch operand']
  #allocation7 [shape = 's32[]', space=sflag, size = 0x4, offset = 0, fixed_abs, tag = 'sflag constant byte address 0x0 - dummy sync flag']
  #allocation9 [shape = 's32[]', space=sflag, size = 0x4, offset = 0, fixed_abs, tag = 'sflag constant byte address 0x0 - dummy sync flag']
  %s0 = inlined_call_operand.vmem [shape: f32[2,384], index: 0, kind: input, shape index: {}]
  %s1 = inlined_call_operand.vmem [shape: f32[2,8,1], index: 1, kind: input, shape index: {}]
  %s2 = inlined_call_operand.vmem [shape: f32[2,8,1], index: 2, kind: input, shape index: {}]
  %s3 = inlined_call_operand.vmem [shape: f32[2,1,4], index: 3, kind: input, shape index: {}]
  %s4 = inlined_call_operand.vmem [shape: f32[2,1,4], index: 4, kind: input, shape index: {}]
  %s5 = inlined_call_operand.vmem [shape: f32[2,128], index: 5, kind: input, shape index: {}]
  %s6 = inlined_call_operand.vmem [shape: f32[1,128], index: 6, kind: input, shape index: {}]
  %s7 = inlined_call_operand.vmem [shape: bf16[128,128], index: 7, kind: input, shape index: {}]
  %s8 = inlined_call_operand.vmem [shape: f32[1,128], index: 8, kind: input, shape index: {}]
  %s9 = inlined_call_operand.hbm [shape: bf16[384,512], index: 9, kind: input, shape index: {}]
  %s10 = inlined_call_operand.vmem [shape: f32[1,512], index: 10, kind: input, shape index: {}]
  %s11 = inlined_call_operand.vmem [shape: bf16[512,128], index: 11, kind: input, shape index: {}]
  %s12 = inlined_call_operand.vmem [shape: f32[1,128], index: 12, kind: input, shape index: {}]
  %s13 = inlined_call_operand.hbm [shape: f32[2,1,8], index: 13, kind: output, shape index: {0}]
  %s14 = inlined_call_operand.vmem [shape: f32[1,2], index: 14, kind: output, shape index: {1}]
  %15 = xla_tuple %s13, %s14
  %s16 = sld [smem:[#allocation0]]
  $region96: #{wp_attention_forward.1} parent=0
    _
  %s18 = ssub.s32 1, %s16
  %s19 = scalar_select 0, %s18, %s16
  $region1: #{wp_attention_forward.1} parent=0
    #allocation5 [shape = 'u8[1024]{0}', space=vmem, size = 0x400, scoped, tag = 'output window, operand 0, single buffered']
    #allocation6 [shape = 's32[1]{0}', space=sflag, size = 0x4, scoped, tag = 'scoped memory for wp_attention_forward.1']
    #allocation8 [shape = 'u32[9]{0}', space=smem, size = 0x24, scoped, tag = 'DMA stride descriptor']
    %20 = vsyncpa [#allocation6], 0
    // Predicated region
    $region2: #{wp_attention_forward.1} parent=1 // pred_check
      _
    $region3: #{wp_attention_forward.1} parent=1 // pred_check_branch
      %22 = sbr.rel (0) target = $region5
    $region4: #{wp_attention_forward.1} parent=1 // pred_region
      _
    $region5: #{wp_attention_forward.1} parent=1 // pred_fallthru
      _
    // Predicated region
    $region6: #{wp_attention_forward.1} parent=1 // pred_check
      _
    $region7: #{wp_attention_forward.1} parent=1 // pred_check_branch
      %24 = sbr.rel (0) target = $region9
    $region8: #{wp_attention_forward.1} parent=1 // pred_region
      _
    $region9: #{wp_attention_forward.1} parent=1 // pred_fallthru
      _
    // Predicated region
    $region10: #{wp_attention_forward.1} parent=1 // pred_check
      _
    $region11: #{wp_attention_forward.1} parent=1 // pred_check_branch
      %26 = sbr.rel (0) target = $region13
    $region12: #{wp_attention_forward.1} parent=1 // pred_region
      _
    $region13: #{wp_attention_forward.1} parent=1 // pred_fallthru
      _
    // Predicated region
    $region14: #{wp_attention_forward.1} parent=1 // pred_check
      _
    $region15: #{wp_attention_forward.1} parent=1 // pred_check_branch
      %28 = sbr.rel (0) target = $region17
    $region16: #{wp_attention_forward.1} parent=1 // pred_region
      _
    $region17: #{wp_attention_forward.1} parent=1 // pred_fallthru
      _
    // Predicated region
    $region18: #{wp_attention_forward.1} parent=1 // pred_check
      _
    $region19: #{wp_attention_forward.1} parent=1 // pred_check_branch
      %30 = sbr.rel (0) target = $region21
    $region20: #{wp_attention_forward.1} parent=1 // pred_region
      _
    $region21: #{wp_attention_forward.1} parent=1 // pred_fallthru
      _
    // Predicated region
    $region22: #{wp_attention_forward.1} parent=1 // pred_check
      _
    $region23: #{wp_attention_forward.1} parent=1 // pred_check_branch
      %32 = sbr.rel (0) target = $region25
    $region24: #{wp_attention_forward.1} parent=1 // pred_region
      _
    $region25: #{wp_attention_forward.1} parent=1 // pred_fallthru
      _
    // Predicated region
    $region26: #{wp_attention_forward.1} parent=1 // pred_check
      _
    $region27: #{wp_attention_forward.1} parent=1 // pred_check_branch
      %34 = sbr.rel (0) target = $region29
    $region28: #{wp_attention_forward.1} parent=1 // pred_region
      _
    $region29: #{wp_attention_forward.1} parent=1 // pred_fallthru
      _
    // Predicated region
    $region30: #{wp_attention_forward.1} parent=1 // pred_check
      _
    $region31: #{wp_attention_forward.1} parent=1 // pred_check_branch
      %36 = sbr.rel (0) target = $region33
    $region32: #{wp_attention_forward.1} parent=1 // pred_region
      _
    $region33: #{wp_attention_forward.1} parent=1 // pred_fallthru
      _
    // Predicated region
    $region34: #{wp_attention_forward.1} parent=1 // pred_check
      _
    $region35: #{wp_attention_forward.1} parent=1 // pred_check_branch
      %38 = sbr.rel (0) target = $region37
    $region36: #{wp_attention_forward.1} parent=1 // pred_region
      _
    $region37: #{wp_attention_forward.1} parent=1 // pred_fallthru
      _
    // Predicated region
    $region38: #{wp_attention_forward.1} parent=1 // pred_check
      _
    $region39: #{wp_attention_forward.1} parent=1 // pred_check_branch
      %40 = sbr.rel (0) target = $region41
    $region40: #{wp_attention_forward.1} parent=1 // pred_region
      _
    $region41: #{wp_attention_forward.1} parent=1 // pred_fallthru
      _
    // Predicated region
    $region42: #{wp_attention_forward.1} parent=1 // pred_check
      _
    $region43: #{wp_attention_forward.1} parent=1 // pred_check_branch
      %42 = sbr.rel (0) target = $region45
    $region44: #{wp_attention_forward.1} parent=1 // pred_region
      _
    $region45: #{wp_attention_forward.1} parent=1 // pred_fallthru
      _
    %s45 = sshll.u32 1, 14
    %s46 = sxor.u32 4294967295, %s45
    %s48 = sld [smem:[#allocation0]]
    %s49 = sadd.s32 2, %s48
    %s51 = sshll.u32 7, 26
    %s52 = sxor.u32 4294967295, %s51
    %s53 = sand.u32 0, %s52
    %s54 = sshll.u32 %s49, 26
    %s55 = sor.u32 %s53, %s54
    %s56 = sshll.u32 [#allocation2], 4
    %s57 = int_to_ptr.vmem [resolvable:$true] %s56
    %60 = sst [smem:[#allocation8]] 512
    %s61 = scalar_lea.smem [#allocation8], 1
    %62 = sst [smem:[%s61]] 512
    %s63 = scalar_lea.smem [#allocation8], 2
    %64 = sst [smem:[%s63]] 4
    %s65 = scalar_lea.smem [#allocation8], 3
    %66 = sst [smem:[%s65]] 64
    %s67 = scalar_lea.smem [#allocation8], 4
    %68 = sst [smem:[%s67]] 128
    %s69 = scalar_lea.smem [#allocation8], 5
    %70 = sst [smem:[%s69]] 2
    %s71 = scalar_lea.smem [#allocation8], 6
    %72 = sst [smem:[%s71]] 256
    %s73 = scalar_lea.smem [#allocation8], 7
    %74 = sst [smem:[%s73]] 64
    %s75 = scalar_lea.smem [#allocation8], 8
    %76 = sst [smem:[%s75]] 4
    %78 = dma.general %s9, 12288, %s57, [#allocation4], [#allocation7], [#allocation8], %s55, 0
    %s79 = scalar_lea.sflag [#allocation4], 1
    %p81 = scmp.lt.u32.totalorder 256, 8
    %p82 = pneg %p81
    // Predicated region
    $region46: #{wp_attention_forward.1} parent=1 // pred_check
      _
    $region47: #{wp_attention_forward.1} parent=1 // pred_check_branch
      %84 = sbr.rel (%p81) target = $region49
    $region48: #{wp_attention_forward.1} parent=1 // pred_region
      %s99 = sand.u32 256, 7
      %p100 = scmp.eq.s32.totalorder %s99, 0
      // Predicated region
      $region61: #{wp_attention_forward.1} parent=48 // pred_check
        %p101 = pneg %p100
      $region62: #{wp_attention_forward.1} parent=48 // pred_check_branch
        %103 = sbr.rel (%p101) target = $region64
      $region63: #{wp_attention_forward.1} parent=48 // pred_region
        loop: start=0, step=1, limit=1
        $region65: #{wp_attention_forward.1} parent=63 // loop_pre_header
          _
        $region66: #{wp_attention_forward.1} parent=63 // loop_header
          %s105 = sphi 0, %s109
          %p106 = scmp.ge.s32.totalorder %s105, 1
          %s110 = sphi %s11, %s11
          %s111 = sphi [#allocation3], [#allocation3]
        $region67: #{wp_attention_forward.1} parent=63 // loop_header_branch
          %108 = sbr.rel (%p106) target = $region71
        $region68: #{wp_attention_forward.1} parent=63 // loop_body
          %v112 = vld [vmem:[%s110] sm:$0xff]
          %113 = vst [vmem:[%s111] sm:$0xff] %v112
          %v114 = vld [vmem:[%s110 + $0x8] sm:$0xff]
          %115 = vst [vmem:[%s111 + $0x8] sm:$0xff] %v114
          %v116 = vld [vmem:[%s110 + $0x10] sm:$0xff]
          %117 = vst [vmem:[%s111 + $0x10] sm:$0xff] %v116
          %v118 = vld [vmem:[%s110 + $0x18] sm:$0xff]
          %119 = vst [vmem:[%s111 + $0x18] sm:$0xff] %v118
          %v120 = vld [vmem:[%s110 + $0x20] sm:$0xff]
          %121 = vst [vmem:[%s111 + $0x20] sm:$0xff] %v120
          %v122 = vld [vmem:[%s110 + $0x28] sm:$0xff]
          %123 = vst [vmem:[%s111 + $0x28] sm:$0xff] %v122
          %v124 = vld [vmem:[%s110 + $0x30] sm:$0xff]
          %125 = vst [vmem:[%s111 + $0x30] sm:$0xff] %v124
          %v126 = vld [vmem:[%s110 + $0x38] sm:$0xff]
          %127 = vst [vmem:[%s111 + $0x38] sm:$0xff] %v126
          %v128 = vld [vmem:[%s110 + $0x40] sm:$0xff]
          %129 = vst [vmem:[%s111 + $0x40] sm:$0xff] %v128
          %v130 = vld [vmem:[%s110 + $0x48] sm:$0xff]
          %131 = vst [vmem:[%s111 + $0x48] sm:$0xff] %v130
          %v132 = vld [vmem:[%s110 + $0x50] sm:$0xff]
          %133 = vst [vmem:[%s111 + $0x50] sm:$0xff] %v132
          %v134 = vld [vmem:[%s110 + $0x58] sm:$0xff]
          %135 = vst [vmem:[%s111 + $0x58] sm:$0xff] %v134
          %v136 = vld [vmem:[%s110 + $0x60] sm:$0xff]
          %137 = vst [vmem:[%s111 + $0x60] sm:$0xff] %v136
          %v138 = vld [vmem:[%s110 + $0x68] sm:$0xff]
          %139 = vst [vmem:[%s111 + $0x68] sm:$0xff] %v138
          %v140 = vld [vmem:[%s110 + $0x70] sm:$0xff]
          %141 = vst [vmem:[%s111 + $0x70] sm:$0xff] %v140
          %v142 = vld [vmem:[%s110 + $0x78] sm:$0xff]
          %143 = vst [vmem:[%s111 + $0x78] sm:$0xff] %v142
          %v144 = vld [vmem:[%s110 + $0x80] sm:$0xff]
          %145 = vst [vmem:[%s111 + $0x80] sm:$0xff] %v144
          %v146 = vld [vmem:[%s110 + $0x88] sm:$0xff]
          %147 = vst [vmem:[%s111 + $0x88] sm:$0xff] %v146
          %v148 = vld [vmem:[%s110 + $0x90] sm:$0xff]
          %149 = vst [vmem:[%s111 + $0x90] sm:$0xff] %v148
          %v150 = vld [vmem:[%s110 + $0x98] sm:$0xff]
          %151 = vst [vmem:[%s111 + $0x98] sm:$0xff] %v150
          %v152 = vld [vmem:[%s110 + $0xa0] sm:$0xff]
          %153 = vst [vmem:[%s111 + $0xa0] sm:$0xff] %v152
          %v154 = vld [vmem:[%s110 + $0xa8] sm:$0xff]
          %155 = vst [vmem:[%s111 + $0xa8] sm:$0xff] %v154
          %v156 = vld [vmem:[%s110 + $0xb0] sm:$0xff]
          %157 = vst [vmem:[%s111 + $0xb0] sm:$0xff] %v156
          %v158 = vld [vmem:[%s110 + $0xb8] sm:$0xff]
          %159 = vst [vmem:[%s111 + $0xb8] sm:$0xff] %v158
          %v160 = vld [vmem:[%s110 + $0xc0] sm:$0xff]
          %161 = vst [vmem:[%s111 + $0xc0] sm:$0xff] %v160
          %v162 = vld [vmem:[%s110 + $0xc8] sm:$0xff]
          %163 = vst [vmem:[%s111 + $0xc8] sm:$0xff] %v162
          %v164 = vld [vmem:[%s110 + $0xd0] sm:$0xff]
          %165 = vst [vmem:[%s111 + $0xd0] sm:$0xff] %v164
          %v166 = vld [vmem:[%s110 + $0xd8] sm:$0xff]
          %167 = vst [vmem:[%s111 + $0xd8] sm:$0xff] %v166
          %v168 = vld [vmem:[%s110 + $0xe0] sm:$0xff]
          %169 = vst [vmem:[%s111 + $0xe0] sm:$0xff] %v168
          %v170 = vld [vmem:[%s110 + $0xe8] sm:$0xff]
          %171 = vst [vmem:[%s111 + $0xe8] sm:$0xff] %v170
          %v172 = vld [vmem:[%s110 + $0xf0] sm:$0xff]
          %173 = vst [vmem:[%s111 + $0xf0] sm:$0xff] %v172
          %v174 = vld [vmem:[%s110 + $0xf8] sm:$0xff]
          %175 = vst [vmem:[%s111 + $0xf8] sm:$0xff] %v174
        $region69: #{wp_attention_forward.1} parent=63 // loop_footer
          %s109 = sadd.s32 1, %s105
        $region70: #{wp_attention_forward.1} parent=63 // loop_footer_branch
          %104 = sbr.rel target = $region66
        $region71: #{wp_attention_forward.1} parent=63 // loop_exit
          _
      $region64: #{wp_attention_forward.1} parent=48 // pred_fallthru
        _
      %p176 = pneg %p100
      // Predicated region
      $region72: #{wp_attention_forward.1} parent=48 // pred_check
        _
      $region73: #{wp_attention_forward.1} parent=48 // pred_check_branch
        %178 = sbr.rel (%p100) target = $region75
      $region74: #{wp_attention_forward.1} parent=48 // pred_region
        %s179 = sand.u32 256, 7
      $region75: #{wp_attention_forward.1} parent=48 // pred_fallthru
        _
    $region49: #{wp_attention_forward.1} parent=1 // pred_fallthru
      _
    // Predicated region
    $region50: #{wp_attention_forward.1} parent=1 // pred_check
      %p85 = pneg %p81
    $region51: #{wp_attention_forward.1} parent=1 // pred_check_branch
      %87 = sbr.rel (%p85) target = $region53
    $region52: #{wp_attention_forward.1} parent=1 // pred_region
      %s88 = sshllo.u32 0, 256
      loop: start=0, step=1, limit=1
      $region54: #{wp_attention_forward.1} parent=52 // loop_pre_header
        _
      $region55: #{wp_attention_forward.1} parent=52 // loop_header
        %s90 = sphi 0, %s94
        %p91 = scmp.ge.s32.totalorder %s90, 1
        %s95 = sphi %s11, %s11
        %s96 = sphi [#allocation3], [#allocation3]
      $region56: #{wp_attention_forward.1} parent=52 // loop_header_branch
        %93 = sbr.rel (%p91) target = $region60
      $region57: #{wp_attention_forward.1} parent=52 // loop_body
        %v97 = vld [vmem:[%s95] sm:%s88]
        %98 = vst [vmem:[%s96] sm:%s88] %v97
      $region58: #{wp_attention_forward.1} parent=52 // loop_footer
        %s94 = sadd.s32 1, %s90
      $region59: #{wp_attention_forward.1} parent=52 // loop_footer_branch
        %89 = sbr.rel target = $region55
      $region60: #{wp_attention_forward.1} parent=52 // loop_exit
        _
    $region53: #{wp_attention_forward.1} parent=1 // pred_fallthru
      _
    // Predicated region
    $region76: #{wp_attention_forward.1} parent=1 // pred_check
      _
    $region77: #{wp_attention_forward.1} parent=1 // pred_check_branch
      %182 = sbr.rel (0) target = $region79
    $region78: #{wp_attention_forward.1} parent=1 // pred_region
      %183 = vsyncadd %s79, 4096
    $region79: #{wp_attention_forward.1} parent=1 // pred_fallthru
      _
    %v184 = vld [vmem:[%s1] sm:$0xff]
    %v185 = vld [vmem:[%s1 + $0x8] sm:$0xff]
    %v186 = vld [vmem:[%s2] sm:$0xff]
    %v187 = vld [vmem:[%s2 + $0x8] sm:$0xff]
    %v188 = vld [vmem:[%s5] sm:$0x1]
    %190 = vset.pattern.permute.xlu0 0
    %191 = vperm.xlu0 %190, %v184
    %v192 = vpop.permute.xlu0 %191
    %195 = vset.pattern.permute.xlu0 0
    %196 = vperm.xlu0 %195, %v185
    %v197 = vpop.permute.xlu0 %196
    %v199 = vlaneseq
    %v200 = vshrl.u32 %v199, 7
    %v201 = vsub.s32 0, %v200
    %v202 = vrot.slane %v188, %v201
    %v203 = vmul.f32 %v192, %v202
    %v204 = vmul.f32 %v197, %v202
    %v205 = vld [vmem:[%s5 + $0x1] sm:$0x1]
    %207 = vset.pattern.permute.xlu0 0
    %208 = vperm.xlu0 %207, %v186
    %v209 = vpop.permute.xlu0 %208
    %212 = vset.pattern.permute.xlu0 0
    %213 = vperm.xlu0 %212, %v187
    %v214 = vpop.permute.xlu0 %213
    %v216 = vlaneseq
    %v217 = vshrl.u32 %v216, 7
    %v218 = vsub.s32 0, %v217
    %v219 = vrot.slane %v205, %v218
    %v220 = vmul.f32 %v209, %v219
    %v221 = vmul.f32 %v214, %v219
    %v222 = vadd.f32 %v203, %v220
    %v223 = vadd.f32 %v204, %v221
    %v224 = vld [vmem:[%s6] sm:$0x1]
    %v226 = vlaneseq
    %v227 = vshrl.u32 %v226, 7
    %v228 = vsub.s32 0, %v227
    %v229 = vrot.slane %v224, %v228
    %v231 = vadd.f32 %v222, %v229
    %v232 = vadd.f32 %v223, %v229
    %vm233 = vcmp.gt.f32.partialorder %v231, 0.0
    %vm234 = vcmp.gt.f32.partialorder %v232, 0.0
    %v235 = vmul.f32 %v231, 0.01
    %v236 = vmul.f32 %v232, 0.01
    %v237 = vsel %vm233, %v231, %v235
    %v238 = vsel %vm234, %v232, %v236
    %v239 = vpack.c.bf16 %v238, %v237
    %v240 = vld [vmem:[%s7] sm:$0xf]
    %v241 = vld [vmem:[%s7 + $0x4] sm:$0xf]
    %v242 = vld [vmem:[%s7 + $0x8] sm:$0xf]
    %v243 = vld [vmem:[%s7 + $0xc] sm:$0xf]
    %v244 = vld [vmem:[%s7 + $0x10] sm:$0xf]
    %v245 = vld [vmem:[%s7 + $0x14] sm:$0xf]
    %v246 = vld [vmem:[%s7 + $0x18] sm:$0xf]
    %v247 = vld [vmem:[%s7 + $0x1c] sm:$0xf]
    %v248 = vld [vmem:[%s7 + $0x20] sm:$0xf]
    %v249 = vld [vmem:[%s7 + $0x24] sm:$0xf]
    %v250 = vld [vmem:[%s7 + $0x28] sm:$0xf]
    %v251 = vld [vmem:[%s7 + $0x2c] sm:$0xf]
    %v252 = vld [vmem:[%s7 + $0x30] sm:$0xf]
    %v253 = vld [vmem:[%s7 + $0x34] sm:$0xf]
    %v254 = vld [vmem:[%s7 + $0x38] sm:$0xf]
    %v255 = vld [vmem:[%s7 + $0x3c] sm:$0xf]
    %v256 = vld [vmem:[%s8] sm:$0x1]
    %v258 = vlaneseq
    %v259 = vshrl.u32 %v258, 7
    %v260 = vsub.s32 0, %v259
    %v261 = vrot.slane %v256, %v260
    %v279 = vunpack.c.l.b16 %v240
    %v280 = vunpack.c.l.b16 %v241
    %v281 = vunpack.c.l.b16 %v242
    %v282 = vunpack.c.l.b16 %v243
    %v283 = vunpack.c.l.b16 %v244
    %v284 = vunpack.c.l.b16 %v245
    %v285 = vunpack.c.l.b16 %v246
    %v286 = vunpack.c.l.b16 %v247
    %v287 = vunpack.c.l.b16 %v248
    %v288 = vunpack.c.l.b16 %v249
    %v289 = vunpack.c.l.b16 %v250
    %v290 = vunpack.c.l.b16 %v251
    %v291 = vunpack.c.l.b16 %v252
    %v292 = vunpack.c.l.b16 %v253
    %v293 = vunpack.c.l.b16 %v254
    %v294 = vunpack.c.l.b16 %v255
    %v295 = vpack.c.b16 %v280, %v279
    %v296 = vpack.c.b16 %v282, %v281
    %v297 = vpack.c.b16 %v284, %v283
    %v298 = vpack.c.b16 %v286, %v285
    %v299 = vpack.c.b16 %v288, %v287
    %v300 = vpack.c.b16 %v290, %v289
    %v301 = vpack.c.b16 %v292, %v291
    %v302 = vpack.c.b16 %v294, %v293
    %311 = vmatprep.subr.bf16.mxu0 0
    %312 = vmatpush1.bf16.msra.mxu0 %v295
    %313 = vmatprep.subr.bf16.mxu0 0
    %314 = vmatpush1.bf16.msra.mxu0 %v296
    %315 = vmatprep.subr.bf16.mxu0 0
    %316 = vmatpush1.bf16.msra.mxu0 %v297
    %317 = vmatprep.subr.bf16.mxu0 0
    %318 = vmatpush1.bf16.msra.mxu0 %v298
    %319 = vmatprep.subr.bf16.mxu0 0
    %320 = vmatpush1.bf16.msra.mxu0 %v299
    %321 = vmatprep.subr.bf16.mxu0 0
    %322 = vmatpush1.bf16.msra.mxu0 %v300
    %323 = vmatprep.subr.bf16.mxu0 0
    %324 = vmatpush1.bf16.msra.mxu0 %v301
    %325 = vmatprep.subr.bf16.mxu0 0
    %326 = vmatpush1.bf16.msra.mxu0 %v302
    %327 = vmatprep.subr.bf16.mxu0 0
    %328 = vmatpush1.bf16.msra.mxu0 0
    %329 = vmatprep.subr.bf16.mxu0 0
    %330 = vmatpush1.bf16.msra.mxu0 0
    %331 = vmatprep.subr.bf16.mxu0 0
    %332 = vmatpush1.bf16.msra.mxu0 0
    %333 = vmatprep.subr.bf16.mxu0 0
    %334 = vmatpush1.bf16.msra.mxu0 0
    %335 = vmatprep.subr.bf16.mxu0 0
    %336 = vmatpush1.bf16.msra.mxu0 0
    %337 = vmatprep.subr.bf16.mxu0 0
    %338 = vmatpush1.bf16.msra.mxu0 0
    %339 = vmatprep.subr.bf16.mxu0 0
    %340 = vmatpush1.bf16.msra.mxu0 0
    %341 = vmatprep.subr.bf16.mxu0 0
    %342 = vmatpush1.bf16.msra.mxu0 0
    %343 = vmatprep.mubr.bf16.mxu0 0
    %344 = vmatmul.mubr.bf16.gmra.mrb[0].mxu0 %v239
    %v345 = vpop.f32.mrb[0].mxu0
    %v346 = vadd.f32 %v261, %v345
    %v347 = vpop.f32.mrb[0].mxu0
    %v348 = vpop.f32.mrb[0].mxu0
    %v349 = vadd.f32 %v261, %v348
    %v350 = vpop.f32.mrb[0].mxu0
    %351 = vdwg.mxu0
    %v352 = vld [vmem:[%s3] sm:$0x1]
    %v353 = vld [vmem:[%s3 + $0x1] sm:$0x1]
    %v354 = vld [vmem:[%s4] sm:$0x1]
    %v355 = vld [vmem:[%s4 + $0x1] sm:$0x1]
    %v358 = vlaneseq
    %v359 = vshrl.u32 %v358, 7
    %v360 = vsub.s32 0, %v359
    %v361 = vrot.slane %v352, %v360
    %v362 = vlaneseq
    %v363 = vshrl.u32 %v362, 7
    %v364 = vsub.s32 0, %v363
    %v365 = vrot.slane %v353, %v364
    %v368 = vsub.f32 %v192, %v361
    %v369 = vsub.f32 %v197, %v365
    %v372 = vlaneseq
    %v373 = vshrl.u32 %v372, 7
    %v374 = vsub.s32 0, %v373
    %v375 = vrot.slane %v354, %v374
    %v376 = vlaneseq
    %v377 = vshrl.u32 %v376, 7
    %v378 = vsub.s32 0, %v377
    %v379 = vrot.slane %v355, %v378
    %v382 = vsub.f32 %v209, %v375
    %v383 = vsub.f32 %v214, %v379
    %v384 = vmul.f32 %v368, %v368
    %v385 = vmul.f32 %v369, %v369
    %v386 = vmul.f32 %v382, %v382
    %v387 = vmul.f32 %v383, %v383
    %v388 = vadd.f32 %v384, %v386
    %v389 = vadd.f32 %v385, %v387
    %v390 = vadd.f32 %v352, %v354
    %v391 = vadd.f32 %v353, %v355
    %vm392 = vcmp.ne.f32.partialorder %v390, 0.0
    %vm393 = vcmp.ne.f32.partialorder %v391, 0.0
    %v394 = vsel %vm392, 1, 0
    %v395 = vsel %vm393, 1, 0
    %v396 = vcvt.s32.f32 %v394
    %v397 = vcvt.s32.f32 %v395
    %v398 = vmul.f32 %v388, -0.055555556
    %v399 = vmul.f32 %v389, -0.055555556
    %v400 = vmul.f32 %v398, 1.442695
    %v401 = vpow.pop %v400
    %v402 = vmul.f32 %v399, 1.442695
    %v403 = vpow.pop %v402
    %v406 = vlaneseq
    %v407 = vshrl.u32 %v406, 7
    %v408 = vsub.s32 0, %v407
    %v409 = vrot.slane %v396, %v408
    %v410 = vlaneseq
    %v411 = vshrl.u32 %v410, 7
    %v412 = vsub.s32 0, %v411
    %v413 = vrot.slane %v397, %v412
    %v416 = vmul.f32 %v401, %v409
    %v417 = vmul.f32 %v403, %v413
    %vm418 = vcmask 31744
    %v419 = vsel %vm418, %v416, 0.0
    %420 = vadd.xlane.f32.xlu0 %v419
    %v421 = vpop.xlane.xlu0 %420
    %v422 = vsel %vm418, %v417, 0.0
    %423 = vadd.xlane.f32.xlu0 %v422
    %v424 = vpop.xlane.xlu0 %423
    %v426 = vsel %vm418, 1.0, 0
    %v429 = vsel %vm418, %v416, 0
    %431 = vmatprep.subr.mxu0 0.0
    %432 = vmatpush1.xpose.msra.mxu0 %v429
    %433 = vmatprep.subr.mxu0 0.0
    %434 = vmatpush1.xpose.msra.mxu0 0.0
    %435 = vmatprep.subr.mxu0 0.0
    %436 = vmatpush1.xpose.msra.mxu0 0.0
    %437 = vmatprep.subr.mxu0 0.0
    %438 = vmatpush1.xpose.msra.mxu0 0.0
    %439 = vmatprep.subr.mxu0 0.0
    %440 = vmatpush1.xpose.msra.mxu0 0.0
    %441 = vmatprep.subr.mxu0 0.0
    %442 = vmatpush1.xpose.msra.mxu0 0.0
    %443 = vmatprep.subr.mxu0 0.0
    %444 = vmatpush1.xpose.msra.mxu0 0.0
    %445 = vmatprep.subr.mxu0 0.0
    %446 = vmatpush1.xpose.msra.mxu0 0.0
    %447 = vmatprep.subr.mxu0 0.0
    %448 = vmatpush1.xpose.msra.mxu0 0.0
    %449 = vmatprep.subr.mxu0 0.0
    %450 = vmatpush1.xpose.msra.mxu0 0.0
    %451 = vmatprep.subr.mxu0 0.0
    %452 = vmatpush1.xpose.msra.mxu0 0.0
    %453 = vmatprep.subr.mxu0 0.0
    %454 = vmatpush1.xpose.msra.mxu0 0.0
    %455 = vmatprep.subr.mxu0 0.0
    %456 = vmatpush1.xpose.msra.mxu0 0.0
    %457 = vmatprep.subr.mxu0 0.0
    %458 = vmatpush1.xpose.msra.mxu0 0.0
    %459 = vmatprep.subr.mxu0 0.0
    %460 = vmatpush1.xpose.msra.mxu0 0.0
    %461 = vmatprep.subr.mxu0 0.0
    %462 = vmatpush1.xpose.msra.mxu0 0.0
    %463 = vmatprep.subr.mxu0 0.0
    %464 = vmatpush1.xpose.msra.mxu0 0.0
    %465 = vmatprep.subr.mxu0 0.0
    %466 = vmatpush1.xpose.msra.mxu0 0.0
    %467 = vmatprep.subr.mxu0 0.0
    %468 = vmatpush1.xpose.msra.mxu0 0.0
    %469 = vmatprep.subr.mxu0 0.0
    %470 = vmatpush1.xpose.msra.mxu0 0.0
    %471 = vmatprep.subr.mxu0 0.0
    %472 = vmatpush1.xpose.msra.mxu0 0.0
    %473 = vmatprep.subr.mxu0 0.0
    %474 = vmatpush1.xpose.msra.mxu0 0.0
    %475 = vmatprep.subr.mxu0 0.0
    %476 = vmatpush1.xpose.msra.mxu0 0.0
    %477 = vmatprep.subr.mxu0 0.0
    %478 = vmatpush1.xpose.msra.mxu0 0.0
    %479 = vmatprep.subr.mxu0 0.0
    %480 = vmatpush1.xpose.msra.mxu0 0.0
    %481 = vmatprep.subr.mxu0 0.0
    %482 = vmatpush1.xpose.msra.mxu0 0.0
    %483 = vmatprep.subr.mxu0 0.0
    %484 = vmatpush1.xpose.msra.mxu0 0.0
    %485 = vmatprep.subr.mxu0 0.0
    %486 = vmatpush1.xpose.msra.mxu0 0.0
    %487 = vmatprep.subr.mxu0 0.0
    %488 = vmatpush1.xpose.msra.mxu0 0.0
    %489 = vmatprep.subr.mxu0 0.0
    %490 = vmatpush1.xpose.msra.mxu0 0.0
    %491 = vmatprep.subr.mxu0 0.0
    %492 = vmatpush1.xpose.msra.mxu0 0.0
    %493 = vmatprep.subr.mxu0 0.0
    %494 = vmatpush1.xpose.msra.mxu0 0.0
    %495 = vmatprep.mubr.f32.mxu0 0.0
    %496 = vmatmul.mubr.f32.gmra.mrb[0].mxu0 %v426
    %v497 = vpop.f32.mrb[0].mxu0
    %v498 = vadd.f32 0.0, %v497
    %v499 = vpop.f32.mrb[0].mxu0
    %500 = vdwg.mxu0
    %v502 = vsel %vm418, %v417, 0
    %504 = vmatprep.subr.mxu0 0.0
    %505 = vmatpush1.xpose.msra.mxu0 %v502
    %506 = vmatprep.subr.mxu0 0.0
    %507 = vmatpush1.xpose.msra.mxu0 0.0
    %508 = vmatprep.subr.mxu0 0.0
    %509 = vmatpush1.xpose.msra.mxu0 0.0
    %510 = vmatprep.subr.mxu0 0.0
    %511 = vmatpush1.xpose.msra.mxu0 0.0
    %512 = vmatprep.subr.mxu0 0.0
    %513 = vmatpush1.xpose.msra.mxu0 0.0
    %514 = vmatprep.subr.mxu0 0.0
    %515 = vmatpush1.xpose.msra.mxu0 0.0
    %516 = vmatprep.subr.mxu0 0.0
    %517 = vmatpush1.xpose.msra.mxu0 0.0
    %518 = vmatprep.subr.mxu0 0.0
    %519 = vmatpush1.xpose.msra.mxu0 0.0
    %520 = vmatprep.subr.mxu0 0.0
    %521 = vmatpush1.xpose.msra.mxu0 0.0
    %522 = vmatprep.subr.mxu0 0.0
    %523 = vmatpush1.xpose.msra.mxu0 0.0
    %524 = vmatprep.subr.mxu0 0.0
    %525 = vmatpush1.xpose.msra.mxu0 0.0
    %526 = vmatprep.subr.mxu0 0.0
    %527 = vmatpush1.xpose.msra.mxu0 0.0
    %528 = vmatprep.subr.mxu0 0.0
    %529 = vmatpush1.xpose.msra.mxu0 0.0
    %530 = vmatprep.subr.mxu0 0.0
    %531 = vmatpush1.xpose.msra.mxu0 0.0
    %532 = vmatprep.subr.mxu0 0.0
    %533 = vmatpush1.xpose.msra.mxu0 0.0
    %534 = vmatprep.subr.mxu0 0.0
    %535 = vmatpush1.xpose.msra.mxu0 0.0
    %536 = vmatprep.subr.mxu0 0.0
    %537 = vmatpush1.xpose.msra.mxu0 0.0
    %538 = vmatprep.subr.mxu0 0.0
    %539 = vmatpush1.xpose.msra.mxu0 0.0
    %540 = vmatprep.subr.mxu0 0.0
    %541 = vmatpush1.xpose.msra.mxu0 0.0
    %542 = vmatprep.subr.mxu0 0.0
    %543 = vmatpush1.xpose.msra.mxu0 0.0
    %544 = vmatprep.subr.mxu0 0.0
    %545 = vmatpush1.xpose.msra.mxu0 0.0
    %546 = vmatprep.subr.mxu0 0.0
    %547 = vmatpush1.xpose.msra.mxu0 0.0
    %548 = vmatprep.subr.mxu0 0.0
    %549 = vmatpush1.xpose.msra.mxu0 0.0
    %550 = vmatprep.subr.mxu0 0.0
    %551 = vmatpush1.xpose.msra.mxu0 0.0
    %552 = vmatprep.subr.mxu0 0.0
    %553 = vmatpush1.xpose.msra.mxu0 0.0
    %554 = vmatprep.subr.mxu0 0.0
    %555 = vmatpush1.xpose.msra.mxu0 0.0
    %556 = vmatprep.subr.mxu0 0.0
    %557 = vmatpush1.xpose.msra.mxu0 0.0
    %558 = vmatprep.subr.mxu0 0.0
    %559 = vmatpush1.xpose.msra.mxu0 0.0
    %560 = vmatprep.subr.mxu0 0.0
    %561 = vmatpush1.xpose.msra.mxu0 0.0
    %562 = vmatprep.subr.mxu0 0.0
    %563 = vmatpush1.xpose.msra.mxu0 0.0
    %564 = vmatprep.subr.mxu0 0.0
    %565 = vmatpush1.xpose.msra.mxu0 0.0
    %566 = vmatprep.subr.mxu0 0.0
    %567 = vmatpush1.xpose.msra.mxu0 0.0
    %568 = vmatprep.mubr.f32.mxu0 0.0
    %569 = vmatmul.mubr.f32.gmra.mrb[0].mxu0 %v426
    %v570 = vpop.f32.mrb[0].mxu0
    %v571 = vadd.f32 0.0, %v570
    %v572 = vpop.f32.mrb[0].mxu0
    %573 = vdwg.mxu0
    %s574 = smul.u32 4, 48
    %s575 = smul.u32 %s574, 4
    %s576 = sshll.u32 %s575, 4
    %577 = dma.done [#allocation4], %s576
    %v578 = vld [vmem:[%s0] sm:$0x3f]
    %v580 = vcombine.high %v578, %v578
    %v582 = vunpack.c.l.s4 1983009808
    %v583 = vunpack.c.0.s8 %v582
    %v584 = vlaneseq
    %v585 = vshrl.u32 %v584, 7
    %v586 = vsub.s32 %v583, %v585
    %v587 = vrot.slane %v578, %v586
    %v589 = vunpack.c.l.s4 1983009808
    %v590 = vunpack.c.0.s8 %v589
    %v591 = vlaneseq
    %v592 = vshrl.u32 %v591, 7
    %v593 = vsub.s32 %v590, %v592
    %v594 = vrot.slane %v580, %v593
    %v595 = vcombine.high %v587, %v587
    %v599 = vpack.c.bf16 %v587, %v587
    %v600 = vpack.c.bf16 %v595, %v595
    %v601 = vpack.c.bf16 %v594, %v594
    %v602 = vld [vmem:[#allocation2] sm:$0xff]
    %v603 = vld [vmem:[#allocation2 + $0x8] sm:$0xff]
    %v604 = vld [vmem:[#allocation2 + $0x10] sm:$0xff]
    %v605 = vld [vmem:[#allocation2 + $0x18] sm:$0xff]
    %v606 = vld [vmem:[#allocation2 + $0x20] sm:$0xff]
    %v607 = vld [vmem:[#allocation2 + $0x28] sm:$0xff]
    %v608 = vld [vmem:[#allocation2 + $0x30] sm:$0xff]
    %v609 = vld [vmem:[#allocation2 + $0x38] sm:$0xff]
    %v610 = vld [vmem:[#allocation2 + $0x40] sm:$0xff]
    %v611 = vld [vmem:[#allocation2 + $0x48] sm:$0xff]
    %v612 = vld [vmem:[#allocation2 + $0x50] sm:$0xff]
    %v613 = vld [vmem:[#allocation2 + $0x58] sm:$0xff]
    %v614 = vld [vmem:[#allocation2 + $0x60] sm:$0xff]
    %v615 = vld [vmem:[#allocation2 + $0x68] sm:$0xff]
    %v616 = vld [vmem:[#allocation2 + $0x70] sm:$0xff]
    %v617 = vld [vmem:[#allocation2 + $0x78] sm:$0xff]
    %v618 = vld [vmem:[#allocation2 + $0x80] sm:$0xff]
    %v619 = vld [vmem:[#allocation2 + $0x88] sm:$0xff]
    %v620 = vld [vmem:[#allocation2 + $0x90] sm:$0xff]
    %v621 = vld [vmem:[#allocation2 + $0x98] sm:$0xff]
    %v622 = vld [vmem:[#allocation2 + $0xa0] sm:$0xff]
    %v623 = vld [vmem:[#allocation2 + $0xa8] sm:$0xff]
    %v624 = vld [vmem:[#allocation2 + $0xb0] sm:$0xff]
    %v625 = vld [vmem:[#allocation2 + $0xb8] sm:$0xff]
    %v626 = vld [vmem:[#allocation2 + $0xc0] sm:$0xff]
    %v627 = vld [vmem:[#allocation2 + $0xc8] sm:$0xff]
    %v628 = vld [vmem:[#allocation2 + $0xd0] sm:$0xff]
    %v629 = vld [vmem:[#allocation2 + $0xd8] sm:$0xff]
    %v630 = vld [vmem:[#allocation2 + $0xe0] sm:$0xff]
    %v631 = vld [vmem:[#allocation2 + $0xe8] sm:$0xff]
    %v632 = vld [vmem:[#allocation2 + $0xf0] sm:$0xff]
    %v633 = vld [vmem:[#allocation2 + $0xf8] sm:$0xff]
    %v634 = vld [vmem:[#allocation2 + $0x100] sm:$0xff]
    %v635 = vld [vmem:[#allocation2 + $0x108] sm:$0xff]
    %v636 = vld [vmem:[#allocation2 + $0x110] sm:$0xff]
    %v637 = vld [vmem:[#allocation2 + $0x118] sm:$0xff]
    %v638 = vld [vmem:[#allocation2 + $0x120] sm:$0xff]
    %v639 = vld [vmem:[#allocation2 + $0x128] sm:$0xff]
    %v640 = vld [vmem:[#allocation2 + $0x130] sm:$0xff]
    %v641 = vld [vmem:[#allocation2 + $0x138] sm:$0xff]
    %v642 = vld [vmem:[#allocation2 + $0x140] sm:$0xff]
    %v643 = vld [vmem:[#allocation2 + $0x148] sm:$0xff]
    %v644 = vld [vmem:[#allocation2 + $0x150] sm:$0xff]
    %v645 = vld [vmem:[#allocation2 + $0x158] sm:$0xff]
    %v646 = vld [vmem:[#allocation2 + $0x160] sm:$0xff]
    %v647 = vld [vmem:[#allocation2 + $0x168] sm:$0xff]
    %v648 = vld [vmem:[#allocation2 + $0x170] sm:$0xff]
    %v649 = vld [vmem:[#allocation2 + $0x178] sm:$0xff]
    %v650 = vld [vmem:[#allocation2 + $0x180] sm:$0xff]
    %v651 = vld [vmem:[#allocation2 + $0x188] sm:$0xff]
    %v652 = vld [vmem:[#allocation2 + $0x190] sm:$0xff]
    %v653 = vld [vmem:[#allocation2 + $0x198] sm:$0xff]
    %v654 = vld [vmem:[#allocation2 + $0x1a0] sm:$0xff]
    %v655 = vld [vmem:[#allocation2 + $0x1a8] sm:$0xff]
    %v656 = vld [vmem:[#allocation2 + $0x1b0] sm:$0xff]
    %v657 = vld [vmem:[#allocation2 + $0x1b8] sm:$0xff]
    %v658 = vld [vmem:[#allocation2 + $0x1c0] sm:$0xff]
    %v659 = vld [vmem:[#allocation2 + $0x1c8] sm:$0xff]
    %v660 = vld [vmem:[#allocation2 + $0x1d0] sm:$0xff]
    %v661 = vld [vmem:[#allocation2 + $0x1d8] sm:$0xff]
    %v662 = vld [vmem:[#allocation2 + $0x1e0] sm:$0xff]
    %v663 = vld [vmem:[#allocation2 + $0x1e8] sm:$0xff]
    %v664 = vld [vmem:[#allocation2 + $0x1f0] sm:$0xff]
    %v665 = vld [vmem:[#allocation2 + $0x1f8] sm:$0xff]
    %v666 = vld [vmem:[#allocation2 + $0x200] sm:$0xff]
    %v667 = vld [vmem:[#allocation2 + $0x208] sm:$0xff]
    %v668 = vld [vmem:[#allocation2 + $0x210] sm:$0xff]
    %v669 = vld [vmem:[#allocation2 + $0x218] sm:$0xff]
    %v670 = vld [vmem:[#allocation2 + $0x220] sm:$0xff]
    %v671 = vld [vmem:[#allocation2 + $0x228] sm:$0xff]
    %v672 = vld [vmem:[#allocation2 + $0x230] sm:$0xff]
    %v673 = vld [vmem:[#allocation2 + $0x238] sm:$0xff]
    %v674 = vld [vmem:[#allocation2 + $0x240] sm:$0xff]
    %v675 = vld [vmem:[#allocation2 + $0x248] sm:$0xff]
    %v676 = vld [vmem:[#allocation2 + $0x250] sm:$0xff]
    %v677 = vld [vmem:[#allocation2 + $0x258] sm:$0xff]
    %v678 = vld [vmem:[#allocation2 + $0x260] sm:$0xff]
    %v679 = vld [vmem:[#allocation2 + $0x268] sm:$0xff]
    %v680 = vld [vmem:[#allocation2 + $0x270] sm:$0xff]
    %v681 = vld [vmem:[#allocation2 + $0x278] sm:$0xff]
    %v682 = vld [vmem:[#allocation2 + $0x280] sm:$0xff]
    %v683 = vld [vmem:[#allocation2 + $0x288] sm:$0xff]
    %v684 = vld [vmem:[#allocation2 + $0x290] sm:$0xff]
    %v685 = vld [vmem:[#allocation2 + $0x298] sm:$0xff]
    %v686 = vld [vmem:[#allocation2 + $0x2a0] sm:$0xff]
    %v687 = vld [vmem:[#allocation2 + $0x2a8] sm:$0xff]
    %v688 = vld [vmem:[#allocation2 + $0x2b0] sm:$0xff]
    %v689 = vld [vmem:[#allocation2 + $0x2b8] sm:$0xff]
    %v690 = vld [vmem:[#allocation2 + $0x2c0] sm:$0xff]
    %v691 = vld [vmem:[#allocation2 + $0x2c8] sm:$0xff]
    %v692 = vld [vmem:[#allocation2 + $0x2d0] sm:$0xff]
    %v693 = vld [vmem:[#allocation2 + $0x2d8] sm:$0xff]
    %v694 = vld [vmem:[#allocation2 + $0x2e0] sm:$0xff]
    %v695 = vld [vmem:[#allocation2 + $0x2e8] sm:$0xff]
    %v696 = vld [vmem:[#allocation2 + $0x2f0] sm:$0xff]
    %v697 = vld [vmem:[#allocation2 + $0x2f8] sm:$0xff]
    %v698 = vld [vmem:[%s10] sm:$0xf]
    %v700 = vlaneseq
    %v701 = vshrl.u32 %v700, 7
    %v702 = vsub.s32 0, %v701
    %v703 = vrot.slane %v698, %v702
    %v704 = vlaneseq
    %v705 = vshrl.u32 %v704, 7
    %v706 = vsub.s32 1, %v705
    %v707 = vrot.slane %v698, %v706
    %v708 = vlaneseq
    %v709 = vshrl.u32 %v708, 7
    %v710 = vsub.s32 2, %v709
    %v711 = vrot.slane %v698, %v710
    %v712 = vlaneseq
    %v713 = vshrl.u32 %v712, 7
    %v714 = vsub.s32 3, %v713
    %v715 = vrot.slane %v698, %v714
    %720 = vmatprep.subr.bf16.mxu0 %v603
    %721 = vmatpush1.bf16.msra.mxu0 %v602
    %722 = vmatprep.subr.bf16.mxu0 %v607
    %723 = vmatpush1.bf16.msra.mxu0 %v606
    %724 = vmatprep.subr.bf16.mxu0 %v611
    %725 = vmatpush1.bf16.msra.mxu0 %v610
    %726 = vmatprep.subr.bf16.mxu0 %v615
    %727 = vmatpush1.bf16.msra.mxu0 %v614
    %728 = vmatprep.subr.bf16.mxu0 %v619
    %729 = vmatpush1.bf16.msra.mxu0 %v618
    %730 = vmatprep.subr.bf16.mxu0 %v623
    %731 = vmatpush1.bf16.msra.mxu0 %v622
    %732 = vmatprep.subr.bf16.mxu0 %v627
    %733 = vmatpush1.bf16.msra.mxu0 %v626
    %734 = vmatprep.subr.bf16.mxu0 %v631
    %735 = vmatpush1.bf16.msra.mxu0 %v630
    %736 = vmatprep.subr.bf16.mxu0 %v635
    %737 = vmatpush1.bf16.msra.mxu0 %v634
    %738 = vmatprep.subr.bf16.mxu0 %v639
    %739 = vmatpush1.bf16.msra.mxu0 %v638
    %740 = vmatprep.subr.bf16.mxu0 %v643
    %741 = vmatpush1.bf16.msra.mxu0 %v642
    %742 = vmatprep.subr.bf16.mxu0 %v647
    %743 = vmatpush1.bf16.msra.mxu0 %v646
    %744 = vmatprep.subr.bf16.mxu0 %v651
    %745 = vmatpush1.bf16.msra.mxu0 %v650
    %746 = vmatprep.subr.bf16.mxu0 %v655
    %747 = vmatpush1.bf16.msra.mxu0 %v654
    %748 = vmatprep.subr.bf16.mxu0 %v659
    %749 = vmatpush1.bf16.msra.mxu0 %v658
    %750 = vmatprep.subr.bf16.mxu0 %v663
    %751 = vmatpush1.bf16.msra.mxu0 %v662
    %752 = vmatprep.mubr.bf16.mxu0 %v600
    %753 = vmatmul.mubr.bf16.gmra.mrb[0].mxu0 %v599
    %v754 = vpop.f32.mrb[0].mxu0
    %v755 = vadd.f32 %v703, %v754
    %v756 = vpop.f32.mrb[0].mxu0
    %v757 = vadd.f32 %v707, %v756
    %v758 = vpop.f32.mrb[0].mxu0
    %v759 = vpop.f32.mrb[0].mxu0
    %760 = vdwg.mxu0
    %761 = vmatprep.subr.bf16.mxu0 %v667
    %762 = vmatpush1.bf16.msra.mxu0 %v666
    %763 = vmatprep.subr.bf16.mxu0 %v671
    %764 = vmatpush1.bf16.msra.mxu0 %v670
    %765 = vmatprep.subr.bf16.mxu0 %v675
    %766 = vmatpush1.bf16.msra.mxu0 %v674
    %767 = vmatprep.subr.bf16.mxu0 %v679
    %768 = vmatpush1.bf16.msra.mxu0 %v678
    %769 = vmatprep.subr.bf16.mxu0 %v683
    %770 = vmatpush1.bf16.msra.mxu0 %v682
    %771 = vmatprep.subr.bf16.mxu0 %v687
    %772 = vmatpush1.bf16.msra.mxu0 %v686
    %773 = vmatprep.subr.bf16.mxu0 %v691
    %774 = vmatpush1.bf16.msra.mxu0 %v690
    %775 = vmatprep.subr.bf16.mxu0 %v695
    %776 = vmatpush1.bf16.msra.mxu0 %v694
    %777 = vmatprep.subr.bf16.mxu0 0
    %778 = vmatpush1.bf16.msra.mxu0 0
    %779 = vmatprep.subr.bf16.mxu0 0
    %780 = vmatpush1.bf16.msra.mxu0 0
    %781 = vmatprep.subr.bf16.mxu0 0
    %782 = vmatpush1.bf16.msra.mxu0 0
    %783 = vmatprep.subr.bf16.mxu0 0
    %784 = vmatpush1.bf16.msra.mxu0 0
    %785 = vmatprep.subr.bf16.mxu0 0
    %786 = vmatpush1.bf16.msra.mxu0 0
    %787 = vmatprep.subr.bf16.mxu0 0
    %788 = vmatpush1.bf16.msra.mxu0 0
    %789 = vmatprep.subr.bf16.mxu0 0
    %790 = vmatpush1.bf16.msra.mxu0 0
    %791 = vmatprep.subr.bf16.mxu0 0
    %792 = vmatpush1.bf16.msra.mxu0 0
    %793 = vmatprep.mubr.bf16.mxu0 0
    %794 = vmatmul.mubr.bf16.gmra.mrb[0].mxu0 %v601
    %v795 = vpop.f32.mrb[0].mxu0
    %v796 = vadd.f32 %v755, %v795
    %v797 = vpop.f32.mrb[0].mxu0
    %v798 = vadd.f32 %v757, %v797
    %v799 = vpop.f32.mrb[0].mxu0
    %v800 = vpop.f32.mrb[0].mxu0
    %801 = vdwg.mxu0
    %802 = vmatprep.subr.bf16.mxu0 %v605
    %803 = vmatpush1.bf16.msra.mxu0 %v604
    %804 = vmatprep.subr.bf16.mxu0 %v609
    %805 = vmatpush1.bf16.msra.mxu0 %v608
    %806 = vmatprep.subr.bf16.mxu0 %v613
    %807 = vmatpush1.bf16.msra.mxu0 %v612
    %808 = vmatprep.subr.bf16.mxu0 %v617
    %809 = vmatpush1.bf16.msra.mxu0 %v616
    %810 = vmatprep.subr.bf16.mxu0 %v621
    %811 = vmatpush1.bf16.msra.mxu0 %v620
    %812 = vmatprep.subr.bf16.mxu0 %v625
    %813 = vmatpush1.bf16.msra.mxu0 %v624
    %814 = vmatprep.subr.bf16.mxu0 %v629
    %815 = vmatpush1.bf16.msra.mxu0 %v628
    %816 = vmatprep.subr.bf16.mxu0 %v633
    %817 = vmatpush1.bf16.msra.mxu0 %v632
    %818 = vmatprep.subr.bf16.mxu0 %v637
    %819 = vmatpush1.bf16.msra.mxu0 %v636
    %820 = vmatprep.subr.bf16.mxu0 %v641
    %821 = vmatpush1.bf16.msra.mxu0 %v640
    %822 = vmatprep.subr.bf16.mxu0 %v645
    %823 = vmatpush1.bf16.msra.mxu0 %v644
    %824 = vmatprep.subr.bf16.mxu0 %v649
    %825 = vmatpush1.bf16.msra.mxu0 %v648
    %826 = vmatprep.subr.bf16.mxu0 %v653
    %827 = vmatpush1.bf16.msra.mxu0 %v652
    %828 = vmatprep.subr.bf16.mxu0 %v657
    %829 = vmatpush1.bf16.msra.mxu0 %v656
    %830 = vmatprep.subr.bf16.mxu0 %v661
    %831 = vmatpush1.bf16.msra.mxu0 %v660
    %832 = vmatprep.subr.bf16.mxu0 %v665
    %833 = vmatpush1.bf16.msra.mxu0 %v664
    %834 = vmatprep.mubr.bf16.mxu0 %v600
    %835 = vmatmul.mubr.bf16.gmra.mrb[0].mxu0 %v599
    %v836 = vpop.f32.mrb[0].mxu0
    %v837 = vadd.f32 %v711, %v836
    %v838 = vpop.f32.mrb[0].mxu0
    %v839 = vadd.f32 %v715, %v838
    %v840 = vpop.f32.mrb[0].mxu0
    %v841 = vpop.f32.mrb[0].mxu0
    %842 = vdwg.mxu0
    %843 = vmatprep.subr.bf16.mxu0 %v669
    %844 = vmatpush1.bf16.msra.mxu0 %v668
    %845 = vmatprep.subr.bf16.mxu0 %v673
    %846 = vmatpush1.bf16.msra.mxu0 %v672
    %847 = vmatprep.subr.bf16.mxu0 %v677
    %848 = vmatpush1.bf16.msra.mxu0 %v676
    %849 = vmatprep.subr.bf16.mxu0 %v681
    %850 = vmatpush1.bf16.msra.mxu0 %v680
    %851 = vmatprep.subr.bf16.mxu0 %v685
    %852 = vmatpush1.bf16.msra.mxu0 %v684
    %853 = vmatprep.subr.bf16.mxu0 %v689
    %854 = vmatpush1.bf16.msra.mxu0 %v688
    %855 = vmatprep.subr.bf16.mxu0 %v693
    %856 = vmatpush1.bf16.msra.mxu0 %v692
    %857 = vmatprep.subr.bf16.mxu0 %v697
    %858 = vmatpush1.bf16.msra.mxu0 %v696
    %859 = vmatprep.subr.bf16.mxu0 0
    %860 = vmatpush1.bf16.msra.mxu0 0
    %861 = vmatprep.subr.bf16.mxu0 0
    %862 = vmatpush1.bf16.msra.mxu0 0
    %863 = vmatprep.subr.bf16.mxu0 0
    %864 = vmatpush1.bf16.msra.mxu0 0
    %865 = vmatprep.subr.bf16.mxu0 0
    %866 = vmatpush1.bf16.msra.mxu0 0
    %867 = vmatprep.subr.bf16.mxu0 0
    %868 = vmatpush1.bf16.msra.mxu0 0
    %869 = vmatprep.subr.bf16.mxu0 0
    %870 = vmatpush1.bf16.msra.mxu0 0
    %871 = vmatprep.subr.bf16.mxu0 0
    %872 = vmatpush1.bf16.msra.mxu0 0
    %873 = vmatprep.subr.bf16.mxu0 0
    %874 = vmatpush1.bf16.msra.mxu0 0
    %875 = vmatprep.mubr.bf16.mxu0 0
    %876 = vmatmul.mubr.bf16.gmra.mrb[0].mxu0 %v601
    %v877 = vpop.f32.mrb[0].mxu0
    %v878 = vadd.f32 %v837, %v877
    %v879 = vpop.f32.mrb[0].mxu0
    %v880 = vadd.f32 %v839, %v879
    %v881 = vpop.f32.mrb[0].mxu0
    %v882 = vpop.f32.mrb[0].mxu0
    %883 = vdwg.mxu0
    %vm884 = vcmp.gt.f32.partialorder %v796, 0.0
    %vm885 = vcmp.gt.f32.partialorder %v798, 0.0
    %vm886 = vcmp.gt.f32.partialorder %v878, 0.0
    %vm887 = vcmp.gt.f32.partialorder %v880, 0.0
    %v888 = vmul.f32 %v796, 0.01
    %v889 = vmul.f32 %v798, 0.01
    %v890 = vmul.f32 %v878, 0.01
    %v891 = vmul.f32 %v880, 0.01
    %v892 = vsel %vm884, %v796, %v888
    %v893 = vsel %vm885, %v798, %v889
    %v894 = vsel %vm886, %v878, %v890
    %v895 = vsel %vm887, %v880, %v891
    %s896 = smul.u32 4, 64
    %s897 = smul.u32 %s896, 1
    %s898 = sshll.u32 %s897, 4
    %899 = dma.done %s79, %s898
    %v900 = vpack.c.bf16 %v892, %v892
    %v901 = vpack.c.bf16 %v893, %v893
    %v902 = vpack.c.bf16 %v894, %v894
    %v903 = vpack.c.bf16 %v895, %v895
    %v904 = vld [vmem:[#allocation3] sm:$0xff]
    %v905 = vld [vmem:[#allocation3 + $0x8] sm:$0xff]
    %v906 = vld [vmem:[#allocation3 + $0x10] sm:$0xff]
    %v907 = vld [vmem:[#allocation3 + $0x18] sm:$0xff]
    %v908 = vld [vmem:[#allocation3 + $0x20] sm:$0xff]
    %v909 = vld [vmem:[#allocation3 + $0x28] sm:$0xff]
    %v910 = vld [vmem:[#allocation3 + $0x30] sm:$0xff]
    %v911 = vld [vmem:[#allocation3 + $0x38] sm:$0xff]
    %v912 = vld [vmem:[#allocation3 + $0x40] sm:$0xff]
    %v913 = vld [vmem:[#allocation3 + $0x48] sm:$0xff]
    %v914 = vld [vmem:[#allocation3 + $0x50] sm:$0xff]
    %v915 = vld [vmem:[#allocation3 + $0x58] sm:$0xff]
    %v916 = vld [vmem:[#allocation3 + $0x60] sm:$0xff]
    %v917 = vld [vmem:[#allocation3 + $0x68] sm:$0xff]
    %v918 = vld [vmem:[#allocation3 + $0x70] sm:$0xff]
    %v919 = vld [vmem:[#allocation3 + $0x78] sm:$0xff]
    %v920 = vld [vmem:[#allocation3 + $0x80] sm:$0xff]
    %v921 = vld [vmem:[#allocation3 + $0x88] sm:$0xff]
    %v922 = vld [vmem:[#allocation3 + $0x90] sm:$0xff]
    %v923 = vld [vmem:[#allocation3 + $0x98] sm:$0xff]
    %v924 = vld [vmem:[#allocation3 + $0xa0] sm:$0xff]
    %v925 = vld [vmem:[#allocation3 + $0xa8] sm:$0xff]
    %v926 = vld [vmem:[#allocation3 + $0xb0] sm:$0xff]
    %v927 = vld [vmem:[#allocation3 + $0xb8] sm:$0xff]
    %v928 = vld [vmem:[#allocation3 + $0xc0] sm:$0xff]
    %v929 = vld [vmem:[#allocation3 + $0xc8] sm:$0xff]
    %v930 = vld [vmem:[#allocation3 + $0xd0] sm:$0xff]
    %v931 = vld [vmem:[#allocation3 + $0xd8] sm:$0xff]
    %v932 = vld [vmem:[#allocation3 + $0xe0] sm:$0xff]
    %v933 = vld [vmem:[#allocation3 + $0xe8] sm:$0xff]
    %v934 = vld [vmem:[#allocation3 + $0xf0] sm:$0xff]
    %v935 = vld [vmem:[#allocation3 + $0xf8] sm:$0xff]
    %v936 = vld [vmem:[%s12] sm:$0x1]
    %v938 = vlaneseq
    %v939 = vshrl.u32 %v938, 7
    %v940 = vsub.s32 0, %v939
    %v941 = vrot.slane %v936, %v940
    %943 = vmatprep.subr.bf16.mxu0 0
    %944 = vmatpush1.bf16.msra.mxu0 %v904
    %945 = vmatprep.subr.bf16.mxu0 0
    %946 = vmatpush1.bf16.msra.mxu0 %v905
    %947 = vmatprep.subr.bf16.mxu0 0
    %948 = vmatpush1.bf16.msra.mxu0 %v906
    %949 = vmatprep.subr.bf16.mxu0 0
    %950 = vmatpush1.bf16.msra.mxu0 %v907
    %951 = vmatprep.subr.bf16.mxu0 0
    %952 = vmatpush1.bf16.msra.mxu0 %v908
    %953 = vmatprep.subr.bf16.mxu0 0
    %954 = vmatpush1.bf16.msra.mxu0 %v909
    %955 = vmatprep.subr.bf16.mxu0 0
    %956 = vmatpush1.bf16.msra.mxu0 %v910
    %957 = vmatprep.subr.bf16.mxu0 0
    %958 = vmatpush1.bf16.msra.mxu0 %v911
    %959 = vmatprep.subr.bf16.mxu0 0
    %960 = vmatpush1.bf16.msra.mxu0 %v912
    %961 = vmatprep.subr.bf16.mxu0 0
    %962 = vmatpush1.bf16.msra.mxu0 %v913
    %963 = vmatprep.subr.bf16.mxu0 0
    %964 = vmatpush1.bf16.msra.mxu0 %v914
    %965 = vmatprep.subr.bf16.mxu0 0
    %966 = vmatpush1.bf16.msra.mxu0 %v915
    %967 = vmatprep.subr.bf16.mxu0 0
    %968 = vmatpush1.bf16.msra.mxu0 %v916
    %969 = vmatprep.subr.bf16.mxu0 0
    %970 = vmatpush1.bf16.msra.mxu0 %v917
    %971 = vmatprep.subr.bf16.mxu0 0
    %972 = vmatpush1.bf16.msra.mxu0 %v918
    %973 = vmatprep.subr.bf16.mxu0 0
    %974 = vmatpush1.bf16.msra.mxu0 %v919
    %975 = vmatprep.mubr.bf16.mxu0 %v901
    %976 = vmatmul.mubr.bf16.gmra.mrb[0].mxu0 %v900
    %v977 = vpop.f32.mrb[0].mxu0
    %v978 = vadd.f32 %v941, %v977
    %v979 = vpop.f32.mrb[0].mxu0
    %v980 = vpop.f32.mrb[0].mxu0
    %v981 = vpop.f32.mrb[0].mxu0
    %982 = vdwg.mxu0
    %983 = vmatprep.subr.bf16.mxu0 0
    %984 = vmatpush1.bf16.msra.mxu0 %v920
    %985 = vmatprep.subr.bf16.mxu0 0
    %986 = vmatpush1.bf16.msra.mxu0 %v921
    %987 = vmatprep.subr.bf16.mxu0 0
    %988 = vmatpush1.bf16.msra.mxu0 %v922
    %989 = vmatprep.subr.bf16.mxu0 0
    %990 = vmatpush1.bf16.msra.mxu0 %v923
    %991 = vmatprep.subr.bf16.mxu0 0
    %992 = vmatpush1.bf16.msra.mxu0 %v924
    %993 = vmatprep.subr.bf16.mxu0 0
    %994 = vmatpush1.bf16.msra.mxu0 %v925
    %995 = vmatprep.subr.bf16.mxu0 0
    %996 = vmatpush1.bf16.msra.mxu0 %v926
    %997 = vmatprep.subr.bf16.mxu0 0
    %998 = vmatpush1.bf16.msra.mxu0 %v927
    %999 = vmatprep.subr.bf16.mxu0 0
    %1000 = vmatpush1.bf16.msra.mxu0 %v928
    %1001 = vmatprep.subr.bf16.mxu0 0
    %1002 = vmatpush1.bf16.msra.mxu0 %v929
    %1003 = vmatprep.subr.bf16.mxu0 0
    %1004 = vmatpush1.bf16.msra.mxu0 %v930
    %1005 = vmatprep.subr.bf16.mxu0 0
    %1006 = vmatpush1.bf16.msra.mxu0 %v931
    %1007 = vmatprep.subr.bf16.mxu0 0
    %1008 = vmatpush1.bf16.msra.mxu0 %v932
    %1009 = vmatprep.subr.bf16.mxu0 0
    %1010 = vmatpush1.bf16.msra.mxu0 %v933
    %1011 = vmatprep.subr.bf16.mxu0 0
    %1012 = vmatpush1.bf16.msra.mxu0 %v934
    %1013 = vmatprep.subr.bf16.mxu0 0
    %1014 = vmatpush1.bf16.msra.mxu0 %v935
    %1015 = vmatprep.mubr.bf16.mxu0 %v903
    %1016 = vmatmul.mubr.bf16.gmra.mrb[0].mxu0 %v902
    %v1017 = vpop.f32.mrb[0].mxu0
    %v1018 = vadd.f32 %v978, %v1017
    %v1019 = vpop.f32.mrb[0].mxu0
    %v1020 = vpop.f32.mrb[0].mxu0
    %v1021 = vpop.f32.mrb[0].mxu0
    %1022 = vdwg.mxu0
    %v1025 = vunpack.c.l.s4 1966171168
    %v1026 = vunpack.c.0.s8 %v1025
    %v1027 = vlaneseq
    %v1028 = vshrl.u32 %v1027, 7
    %v1029 = vsub.s32 %v1026, %v1028
    %v1030 = vrot.slane %v1018, %v1029
    %v1031 = vcombine.high %v1030, %v1030
    %v1033 = vunpack.c.l.s4 1966171168
    %v1034 = vunpack.c.0.s8 %v1033
    %v1035 = vlaneseq
    %v1036 = vshrl.u32 %v1035, 7
    %v1037 = vsub.s32 %v1034, %v1036
    %v1038 = vrot.slane %v1030, %v1037
    %v1040 = vunpack.c.l.s4 1966171168
    %v1041 = vunpack.c.0.s8 %v1040
    %v1042 = vlaneseq
    %v1043 = vshrl.u32 %v1042, 7
    %v1044 = vsub.s32 %v1041, %v1043
    %v1045 = vrot.slane %v1031, %v1044
    %v1048 = vpack.c.bf16 %v1038, %v1038
    %v1049 = vpack.c.bf16 %v1045, %v1045
    %v1050 = vpack.c.bf16 %v346, %v346
    %v1051 = vpack.c.bf16 %v349, %v349
    %1052 = vmatprep.subr.bf16.mxu0 0
    %1053 = vmatpush1.bf16.xpose.msra.mxu0 %v1050
    %1054 = vmatprep.subr.bf16.mxu0 0
    %1055 = vmatpush1.bf16.xpose.msra.mxu0 0
    %1056 = vmatprep.subr.bf16.mxu0 0
    %1057 = vmatpush1.bf16.xpose.msra.mxu0 0
    %1058 = vmatprep.subr.bf16.mxu0 0
    %1059 = vmatpush1.bf16.xpose.msra.mxu0 0
    %1060 = vmatprep.subr.bf16.mxu0 0
    %1061 = vmatpush1.bf16.xpose.msra.mxu0 0
    %1062 = vmatprep.subr.bf16.mxu0 0
    %1063 = vmatpush1.bf16.xpose.msra.mxu0 0
    %1064 = vmatprep.subr.bf16.mxu0 0
    %1065 = vmatpush1.bf16.xpose.msra.mxu0 0
    %1066 = vmatprep.subr.bf16.mxu0 0
    %1067 = vmatpush1.bf16.xpose.msra.mxu0 0
    %1068 = vmatprep.subr.bf16.mxu0 0
    %1069 = vmatpush1.bf16.xpose.msra.mxu0 0
    %1070 = vmatprep.subr.bf16.mxu0 0
    %1071 = vmatpush1.bf16.xpose.msra.mxu0 0
    %1072 = vmatprep.subr.bf16.mxu0 0
    %1073 = vmatpush1.bf16.xpose.msra.mxu0 0
    %1074 = vmatprep.subr.bf16.mxu0 0
    %1075 = vmatpush1.bf16.xpose.msra.mxu0 0
    %1076 = vmatprep.subr.bf16.mxu0 0
    %1077 = vmatpush1.bf16.xpose.msra.mxu0 0
    %1078 = vmatprep.subr.bf16.mxu0 0
    %1079 = vmatpush1.bf16.xpose.msra.mxu0 0
    %1080 = vmatprep.subr.bf16.mxu0 0
    %1081 = vmatpush1.bf16.xpose.msra.mxu0 0
    %1082 = vmatprep.subr.bf16.mxu0 0
    %1083 = vmatpush1.bf16.xpose.msra.mxu0 0
    %1084 = vmatprep.mubr.bf16.mxu0 0
    %1085 = vmatmul.mubr.bf16.gmra.mrb[0].mxu0 %v1048
    %v1086 = vpop.f32.mrb[0].mxu0
    %v1087 = vadd.f32 0.0, %v1086
    %v1088 = vpop.f32.mrb[0].mxu0
    %v1089 = vpop.f32.mrb[0].mxu0
    %v1090 = vpop.f32.mrb[0].mxu0
    %1091 = vdwg.mxu0
    %1092 = vmatprep.subr.bf16.mxu0 0
    %1093 = vmatpush1.bf16.xpose.msra.mxu0 %v1051
    %1094 = vmatprep.subr.bf16.mxu0 0
    %1095 = vmatpush1.bf16.xpose.msra.mxu0 0
    %1096 = vmatprep.subr.bf16.mxu0 0
    %1097 = vmatpush1.bf16.xpose.msra.mxu0 0
    %1098 = vmatprep.subr.bf16.mxu0 0
    %1099 = vmatpush1.bf16.xpose.msra.mxu0 0
    %1100 = vmatprep.subr.bf16.mxu0 0
    %1101 = vmatpush1.bf16.xpose.msra.mxu0 0
    %1102 = vmatprep.subr.bf16.mxu0 0
    %1103 = vmatpush1.bf16.xpose.msra.mxu0 0
    %1104 = vmatprep.subr.bf16.mxu0 0
    %1105 = vmatpush1.bf16.xpose.msra.mxu0 0
    %1106 = vmatprep.subr.bf16.mxu0 0
    %1107 = vmatpush1.bf16.xpose.msra.mxu0 0
    %1108 = vmatprep.subr.bf16.mxu0 0
    %1109 = vmatpush1.bf16.xpose.msra.mxu0 0
    %1110 = vmatprep.subr.bf16.mxu0 0
    %1111 = vmatpush1.bf16.xpose.msra.mxu0 0
    %1112 = vmatprep.subr.bf16.mxu0 0
    %1113 = vmatpush1.bf16.xpose.msra.mxu0 0
    %1114 = vmatprep.subr.bf16.mxu0 0
    %1115 = vmatpush1.bf16.xpose.msra.mxu0 0
    %1116 = vmatprep.subr.bf16.mxu0 0
    %1117 = vmatpush1.bf16.xpose.msra.mxu0 0
    %1118 = vmatprep.subr.bf16.mxu0 0
    %1119 = vmatpush1.bf16.xpose.msra.mxu0 0
    %1120 = vmatprep.subr.bf16.mxu0 0
    %1121 = vmatpush1.bf16.xpose.msra.mxu0 0
    %1122 = vmatprep.subr.bf16.mxu0 0
    %1123 = vmatpush1.bf16.xpose.msra.mxu0 0
    %1124 = vmatprep.mubr.bf16.mxu0 0
    %1125 = vmatmul.mubr.bf16.gmra.mrb[0].mxu0 %v1049
    %v1126 = vpop.f32.mrb[0].mxu0
    %v1127 = vadd.f32 0.0, %v1126
    %v1128 = vpop.f32.mrb[0].mxu0
    %v1129 = vpop.f32.mrb[0].mxu0
    %v1130 = vpop.f32.mrb[0].mxu0
    %1131 = vdwg.mxu0
    %v1132 = vunpack.c.l.bf16 %v1050
    %v1133 = vunpack.c.l.bf16 %v1051
    %v1134 = vunpack.c.l.bf16 %v1048
    %v1135 = vunpack.c.l.bf16 %v1049
    %v1136 = vlaneseq
    %v1137 = vshrl.u32 %v1136, 7
    %v1138 = vsub.s32 0, %v1137
    %v1139 = vrot.slane %v1134, %v1138
    %v1140 = vlaneseq
    %v1141 = vshrl.u32 %v1140, 7
    %v1142 = vsub.s32 0, %v1141
    %v1143 = vrot.slane %v1135, %v1142
    %v1144 = vmul.f32 %v1132, %v1139
    %v1145 = vmul.f32 %v1133, %v1143
    %1146 = vadd.xlane.f32.xlu0 %v1144
    %v1147 = vpop.xlane.xlu0 %1146
    %1148 = vadd.xlane.f32.xlu0 %v1145
    %v1149 = vpop.xlane.xlu0 %1148
    %vm1150 = vcmask 57344
    %v1151 = vsel %vm1150, %v1087, -inf
    %1152 = vmax.xlane.f32.xlu0 %v1151
    %v1153 = vpop.xlane.xlu0 %1152
    %v1154 = vsel %vm1150, %v1127, -inf
    %1155 = vmax.xlane.f32.xlu0 %v1154
    %v1156 = vpop.xlane.xlu0 %1155
    %v1157 = vsub.f32 %v1087, %v1153
    %v1158 = vsub.f32 %v1127, %v1156
    %v1159 = vmul.f32 %v1157, 1.442695
    %v1160 = vpow.pop %v1159
    %v1161 = vmul.f32 %v1158, 1.442695
    %v1162 = vpow.pop %v1161
    %v1163 = vsel %vm1150, %v1160, 0.0
    %1164 = vadd.xlane.f32.xlu0 %v1163
    %v1165 = vpop.xlane.xlu0 %1164
    %v1166 = vsel %vm1150, %v1162, 0.0
    %1167 = vadd.xlane.f32.xlu0 %v1166
    %v1168 = vpop.xlane.xlu0 %1167
    %v1169 = vrcp.pop %v1165
    %v1170 = vmul.f32 1.0, %v1169
    %v1171 = vrcp.pop %v1168
    %v1172 = vmul.f32 1.0, %v1171
    %v1173 = vmul.f32 %v1160, %v1170
    %v1174 = vmul.f32 %v1162, %v1172
    %v1175 = vlaneseq
    %v1176 = vshrl.u32 %v1175, 7
    %v1177 = vsub.s32 0, %v1176
    %v1178 = vrot.slane %v1153, %v1177
    %v1179 = vlaneseq
    %v1180 = vshrl.u32 %v1179, 7
    %v1181 = vsub.s32 0, %v1180
    %v1182 = vrot.slane %v1156, %v1181
    %v1183 = vsub.f32 %v1147, %v1178
    %v1184 = vsub.f32 %v1149, %v1182
    %v1185 = vmul.f32 %v1183, 1.442695
    %v1186 = vpow.pop %v1185
    %v1187 = vmul.f32 %v1184, 1.442695
    %v1188 = vpow.pop %v1187
    %v1189 = vlaneseq
    %v1190 = vshrl.u32 %v1189, 7
    %v1191 = vsub.s32 0, %v1190
    %v1192 = vrot.slane %v1170, %v1191
    %v1193 = vlaneseq
    %v1194 = vshrl.u32 %v1193, 7
    %v1195 = vsub.s32 0, %v1194
    %v1196 = vrot.slane %v1172, %v1195
    %v1197 = vmul.f32 %v1186, %v1192
    %v1198 = vmul.f32 %v1188, %v1196
    %1199 = vst.msk [vmem:[#allocation5] sm:$0x1] %vm1150, %v1173
    %1200 = vst.msk [vmem:[#allocation5 + $0x1] sm:$0x1] %vm1150, %v1174
    %v1201 = vadd.f32 %v1173, 1e-08
    %v1202 = vadd.f32 %v1174, 1e-08
    %v1203 = vlog2.pop %v1201
    %v1204 = vmul.f32 %v1203, 0.6931472
    %v1205 = vlog2.pop %v1202
    %v1206 = vmul.f32 %v1205, 0.6931472
    %v1207 = vmul.f32 %v1173, %v1204
    %v1208 = vmul.f32 %v1174, %v1206
    %v1209 = vsel %vm1150, %v1207, 0.0
    %1210 = vadd.xlane.f32.xlu0 %v1209
    %v1211 = vpop.xlane.xlu0 %1210
    %v1212 = vsel %vm1150, %v1208, 0.0
    %1213 = vadd.xlane.f32.xlu0 %v1212
    %v1214 = vpop.xlane.xlu0 %1213
    %v1215 = vlaneseq
    %v1216 = vshrl.u32 %v1215, 7
    %v1217 = vsub.s32 0, %v1216
    %v1218 = vrot.slane %v498, %v1217
    %v1219 = vlaneseq
    %v1220 = vshrl.u32 %v1219, 7
    %v1221 = vsub.s32 0, %v1220
    %v1222 = vrot.slane %v571, %v1221
    %v1223 = vsub.f32 %v421, %v1218
    %v1224 = vsub.f32 %v424, %v1222
    %v1225 = vlaneseq
    %v1226 = vshrl.u32 %v1225, 7
    %v1227 = vsub.s32 0, %v1226
    %v1228 = vrot.slane %v1173, %v1227
    %v1229 = vlaneseq
    %v1230 = vshrl.u32 %v1229, 7
    %v1231 = vsub.s32 0, %v1230
    %v1232 = vrot.slane %v1174, %v1231
    %v1233 = vsub.f32 %v1197, %v1228
    %v1234 = vsub.f32 %v1198, %v1232
    %vm1235 = vcmp.gt.f32.partialorder %v1223, 0.0
    %vm1236 = vcmp.gt.f32.partialorder %v1224, 0.0
    %vm1237 = vcmp.lt.f32.partialorder %v1223, 0.0
    %vm1238 = vcmp.lt.f32.partialorder %v1224, 0.0
    %v1239 = vsel %vm1237, -1.0, 0.0
    %v1240 = vsel %vm1238, -1.0, 0.0
    %v1241 = vsel %vm1235, 1.0, %v1239
    %v1242 = vsel %vm1236, 1.0, %v1240
    %v1243 = vsub.f32 0.0, %v1241
    %v1244 = vsub.f32 0.0, %v1242
    %v1245 = vmul.f32 %v1243, %v1233
    %v1246 = vmul.f32 %v1244, %v1234
    %v1247 = vadd.f32 %v1245, 0.1
    %v1248 = vadd.f32 %v1246, 0.1
    %v1249 = vmax.f32 %v1247, 0.0
    %v1250 = vmax.f32 %v1248, 0.0
    %vm1251 = vcmask 64512
    %v1252 = vsel %vm1251, 1.0, 0
    %1254 = vmatprep.subr.mxu0 0.0
    %1255 = vmatpush1.msra.mxu0 %v1249
    %1256 = vmatprep.subr.mxu0 0.0
    %1257 = vmatpush1.msra.mxu0 0.0
    %1258 = vmatprep.subr.mxu0 0.0
    %1259 = vmatpush1.msra.mxu0 0.0
    %1260 = vmatprep.subr.mxu0 0.0
    %1261 = vmatpush1.msra.mxu0 0.0
    %1262 = vmatprep.subr.mxu0 0.0
    %1263 = vmatpush1.msra.mxu0 0.0
    %1264 = vmatprep.subr.mxu0 0.0
    %1265 = vmatpush1.msra.mxu0 0.0
    %1266 = vmatprep.subr.mxu0 0.0
    %1267 = vmatpush1.msra.mxu0 0.0
    %1268 = vmatprep.subr.mxu0 0.0
    %1269 = vmatpush1.msra.mxu0 0.0
    %1270 = vmatprep.subr.mxu0 0.0
    %1271 = vmatpush1.msra.mxu0 0.0
    %1272 = vmatprep.subr.mxu0 0.0
    %1273 = vmatpush1.msra.mxu0 0.0
    %1274 = vmatprep.subr.mxu0 0.0
    %1275 = vmatpush1.msra.mxu0 0.0
    %1276 = vmatprep.subr.mxu0 0.0
    %1277 = vmatpush1.msra.mxu0 0.0
    %1278 = vmatprep.subr.mxu0 0.0
    %1279 = vmatpush1.msra.mxu0 0.0
    %1280 = vmatprep.subr.mxu0 0.0
    %1281 = vmatpush1.msra.mxu0 0.0
    %1282 = vmatprep.subr.mxu0 0.0
    %1283 = vmatpush1.msra.mxu0 0.0
    %1284 = vmatprep.subr.mxu0 0.0
    %1285 = vmatpush1.msra.mxu0 0.0
    %1286 = vmatprep.subr.mxu0 0.0
    %1287 = vmatpush1.msra.mxu0 0.0
    %1288 = vmatprep.subr.mxu0 0.0
    %1289 = vmatpush1.msra.mxu0 0.0
    %1290 = vmatprep.subr.mxu0 0.0
    %1291 = vmatpush1.msra.mxu0 0.0
    %1292 = vmatprep.subr.mxu0 0.0
    %1293 = vmatpush1.msra.mxu0 0.0
    %1294 = vmatprep.subr.mxu0 0.0
    %1295 = vmatpush1.msra.mxu0 0.0
    %1296 = vmatprep.subr.mxu0 0.0
    %1297 = vmatpush1.msra.mxu0 0.0
    %1298 = vmatprep.subr.mxu0 0.0
    %1299 = vmatpush1.msra.mxu0 0.0
    %1300 = vmatprep.subr.mxu0 0.0
    %1301 = vmatpush1.msra.mxu0 0.0
    %1302 = vmatprep.subr.mxu0 0.0
    %1303 = vmatpush1.msra.mxu0 0.0
    %1304 = vmatprep.subr.mxu0 0.0
    %1305 = vmatpush1.msra.mxu0 0.0
    %1306 = vmatprep.subr.mxu0 0.0
    %1307 = vmatpush1.msra.mxu0 0.0
    %1308 = vmatprep.subr.mxu0 0.0
    %1309 = vmatpush1.msra.mxu0 0.0
    %1310 = vmatprep.subr.mxu0 0.0
    %1311 = vmatpush1.msra.mxu0 0.0
    %1312 = vmatprep.subr.mxu0 0.0
    %1313 = vmatpush1.msra.mxu0 0.0
    %1314 = vmatprep.subr.mxu0 0.0
    %1315 = vmatpush1.msra.mxu0 0.0
    %1316 = vmatprep.subr.mxu0 0.0
    %1317 = vmatpush1.msra.mxu0 0.0
    %1318 = vmatprep.mubr.f32.mxu0 0.0
    %1319 = vmatmul.mubr.f32.gmra.mrb[0].mxu0 %v1252
    %v1320 = vpop.f32.mrb[0].mxu0
    %v1321 = vadd.f32 0.0, %v1320
    %v1322 = vpop.f32.mrb[0].mxu0
    %1323 = vdwg.mxu0
    %1324 = vmatprep.subr.mxu0 0.0
    %1325 = vmatpush1.msra.mxu0 %v1250
    %1326 = vmatprep.subr.mxu0 0.0
    %1327 = vmatpush1.msra.mxu0 0.0
    %1328 = vmatprep.subr.mxu0 0.0
    %1329 = vmatpush1.msra.mxu0 0.0
    %1330 = vmatprep.subr.mxu0 0.0
    %1331 = vmatpush1.msra.mxu0 0.0
    %1332 = vmatprep.subr.mxu0 0.0
    %1333 = vmatpush1.msra.mxu0 0.0
    %1334 = vmatprep.subr.mxu0 0.0
    %1335 = vmatpush1.msra.mxu0 0.0
    %1336 = vmatprep.subr.mxu0 0.0
    %1337 = vmatpush1.msra.mxu0 0.0
    %1338 = vmatprep.subr.mxu0 0.0
    %1339 = vmatpush1.msra.mxu0 0.0
    %1340 = vmatprep.subr.mxu0 0.0
    %1341 = vmatpush1.msra.mxu0 0.0
    %1342 = vmatprep.subr.mxu0 0.0
    %1343 = vmatpush1.msra.mxu0 0.0
    %1344 = vmatprep.subr.mxu0 0.0
    %1345 = vmatpush1.msra.mxu0 0.0
    %1346 = vmatprep.subr.mxu0 0.0
    %1347 = vmatpush1.msra.mxu0 0.0
    %1348 = vmatprep.subr.mxu0 0.0
    %1349 = vmatpush1.msra.mxu0 0.0
    %1350 = vmatprep.subr.mxu0 0.0
    %1351 = vmatpush1.msra.mxu0 0.0
    %1352 = vmatprep.subr.mxu0 0.0
    %1353 = vmatpush1.msra.mxu0 0.0
    %1354 = vmatprep.subr.mxu0 0.0
    %1355 = vmatpush1.msra.mxu0 0.0
    %1356 = vmatprep.subr.mxu0 0.0
    %1357 = vmatpush1.msra.mxu0 0.0
    %1358 = vmatprep.subr.mxu0 0.0
    %1359 = vmatpush1.msra.mxu0 0.0
    %1360 = vmatprep.subr.mxu0 0.0
    %1361 = vmatpush1.msra.mxu0 0.0
    %1362 = vmatprep.subr.mxu0 0.0
    %1363 = vmatpush1.msra.mxu0 0.0
    %1364 = vmatprep.subr.mxu0 0.0
    %1365 = vmatpush1.msra.mxu0 0.0
    %1366 = vmatprep.subr.mxu0 0.0
    %1367 = vmatpush1.msra.mxu0 0.0
    %1368 = vmatprep.subr.mxu0 0.0
    %1369 = vmatpush1.msra.mxu0 0.0
    %1370 = vmatprep.subr.mxu0 0.0
    %1371 = vmatpush1.msra.mxu0 0.0
    %1372 = vmatprep.subr.mxu0 0.0
    %1373 = vmatpush1.msra.mxu0 0.0
    %1374 = vmatprep.subr.mxu0 0.0
    %1375 = vmatpush1.msra.mxu0 0.0
    %1376 = vmatprep.subr.mxu0 0.0
    %1377 = vmatpush1.msra.mxu0 0.0
    %1378 = vmatprep.subr.mxu0 0.0
    %1379 = vmatpush1.msra.mxu0 0.0
    %1380 = vmatprep.subr.mxu0 0.0
    %1381 = vmatpush1.msra.mxu0 0.0
    %1382 = vmatprep.subr.mxu0 0.0
    %1383 = vmatpush1.msra.mxu0 0.0
    %1384 = vmatprep.subr.mxu0 0.0
    %1385 = vmatpush1.msra.mxu0 0.0
    %1386 = vmatprep.subr.mxu0 0.0
    %1387 = vmatpush1.msra.mxu0 0.0
    %1388 = vmatprep.mubr.f32.mxu0 0.0
    %1389 = vmatmul.mubr.f32.gmra.mrb[0].mxu0 %v1252
    %v1390 = vpop.f32.mrb[0].mxu0
    %v1391 = vadd.f32 0.0, %v1390
    %v1392 = vpop.f32.mrb[0].mxu0
    %1393 = vdwg.mxu0
    %v1394 = vsel %vm1150, %v1321, 0.0
    %1395 = vadd.xlane.f32.xlu0 %v1394
    %v1396 = vpop.xlane.xlu0 %1395
    %v1397 = vsel %vm1150, %v1391, 0.0
    %1398 = vadd.xlane.f32.xlu0 %v1397
    %v1399 = vpop.xlane.xlu0 %1398
    %v1400 = vmul.f32 %v1211, 0.5
    %v1401 = vmul.f32 %v1396, 0.0078125
    %v1402 = vmul.f32 %v1214, 0.5
    %v1403 = vadd.f32 %v1400, %v1402
    %v1404 = vmul.f32 %v1399, 0.0078125
    %v1405 = vadd.f32 %v1401, %v1404
    %vm1406 = vcmask 7168
    %v1407 = vsel %vm1406, %v1403, %v1405
    %vm1408 = vcmask 8192
    %1409 = vst.msk [vmem:[%s14] sm:$0x1] %vm1408, %v1407
    // Predicated region
    $region80: #{wp_attention_forward.1} parent=1 // pred_check
      _
    $region81: #{wp_attention_forward.1} parent=1 // pred_check_branch
      %1411 = sbr.rel (0) target = $region83
    $region82: #{wp_attention_forward.1} parent=1 // pred_region
      %s1413 = ssub.s32 32, 32
      %1414 = vsyncadd [#allocation6], %s1413
      %s1415 = sshll.u32 [#allocation5], 4
      %s1416 = int_to_ptr.vmem [resolvable:$true] %s1415
      %1421 = dma.vmem_to_hbm [thread:$0]  %s1416, 32, %s13, [#allocation6], 16, 16, 1
    $region83: #{wp_attention_forward.1} parent=1 // pred_fallthru
      _
    // Predicated region
    $region84: #{wp_attention_forward.1} parent=1 // pred_check
      _
    $region85: #{wp_attention_forward.1} parent=1 // pred_check_branch
      %1423 = sbr.rel (0) target = $region87
    $region86: #{wp_attention_forward.1} parent=1 // pred_region
      _
    $region87: #{wp_attention_forward.1} parent=1 // pred_fallthru
      _
    // Predicated region
    $region88: #{wp_attention_forward.1} parent=1 // pred_check
      _
    $region89: #{wp_attention_forward.1} parent=1 // pred_check_branch
      %1425 = sbr.rel (0) target = $region91
    $region90: #{wp_attention_forward.1} parent=1 // pred_region
      %1426 = dma.done [#allocation6], 32
    $region91: #{wp_attention_forward.1} parent=1 // pred_fallthru
      _
    // Predicated region
    $region92: #{wp_attention_forward.1} parent=1 // pred_check
      _
    $region93: #{wp_attention_forward.1} parent=1 // pred_check_branch
      %1428 = sbr.rel (0) target = $region95
    $region94: #{wp_attention_forward.1} parent=1 // pred_region
      _
    $region95: #{wp_attention_forward.1} parent=1 // pred_fallthru
      _
    %1429 = vsyncpa [#allocation6], 1
  %1430 = vsyncmov [#allocation4]
  %s1431 = vpop.sfrf %1430
  %p1432 = scmp.eq.s32.totalorder %s1431, 0
  %p1433 = pneg %p1432
  %1435 = shalt.err (%p1433)
  %s1436 = scalar_lea.sflag [#allocation4], 1
  %1437 = vsyncmov %s1436
  %s1438 = vpop.sfrf %1437
  %p1439 = scmp.eq.s32.totalorder %s1438, 0
  %p1440 = pneg %p1439
  %1442 = shalt.err (%p1440)

</llo_original>
